<compile_context>
chip_gen: v5e
topology: v5e:2x2
jax: 0.10.0
libtpu: 0.0.40
codegen_flags: <defaults>
</compile_context>

<pallas_src>
import functools

import jax
import jax.numpy as jnp
from jax import lax
from jax.experimental import pallas as pl
from jax.experimental.pallas import tpu as pltpu

BN_EPS = 1e-5
LANE = 128
SUBLANE = 8


def _round_up(x, m):
    return ((x + m - 1) // m) * m


def _mxu_dot(a, b, use_bf16):
    if use_bf16:
        a = a.astype(jnp.bfloat16)
        b = b.astype(jnp.bfloat16)
    return jnp.dot(a, b, preferred_element_type=jnp.float32)


# ----------------------------------------------------------------------------- 
# Path 1: whole batch in one grid step (small n).  Exact centered mean/var.
# -----------------------------------------------------------------------------
def _fused_single_kernel(x_ref, w1_ref, g_ref, bt_ref, w2_ref, b2_ref, w3_ref,
                         b3_ref, o_ref, *, use_bf16):
    h1 = _mxu_dot(x_ref[...], w1_ref[...], use_bf16)          # (n, hid_pad) f32
    inv_n = jnp.float32(1.0 / x_ref.shape[0])
    mean = jnp.sum(h1, axis=0, keepdims=True) * inv_n
    c = h1 - mean
    var = jnp.sum(c * c, axis=0, keepdims=True) * inv_n       # biased, two-pass
    a = g_ref[...] * lax.rsqrt(var + BN_EPS)
    h = jnp.maximum(c * a + bt_ref[...], 0.0)                 # BN + ReLU
    h = jnp.maximum(_mxu_dot(h, w2_ref[...], use_bf16) + b2_ref[...], 0.0)
    h = _mxu_dot(h, w3_ref[...], use_bf16) + b3_ref[...]
    o_ref[...] = jnp.maximum(h, 0.0).astype(o_ref.dtype)


# ----------------------------------------------------------------------------- 
# Path 2 / pass A: per-row-tile partial BN statistics (parallel over tiles).
# -----------------------------------------------------------------------------
def _stats_kernel(x_ref, w1_ref, stats_ref, *, n_valid, tile_rows, use_bf16):
    i = pl.program_id(0)
    is_last = i == pl.num_programs(0) - 1
    h1 = _mxu_dot(x_ref[...], w1_ref[...], use_bf16)          # (tile_rows, hid_pad)

    def write_stats(h):
        s = jnp.sum(h, axis=0, keepdims=True)
        sq = jnp.sum(h * h, axis=0, keepdims=True)
        pad = jnp.zeros((stats_ref.shape[1] - 2, h.shape[1]), jnp.float32)
        stats_ref[0] = jnp.concatenate([s, sq, pad], axis=0)

    @pl.when(jnp.logical_not(is_last))
    def _():                                  # interior tiles: fully valid, no mask
        write_stats(h1)

    @pl.when(is_last)
    def _():                                  # ragged last tile: mask OOB rows
        row = i * tile_rows + lax.broadcasted_iota(jnp.int32, (tile_rows, 1), 0)
        write_stats(jnp.where(row < n_valid, h1, 0.0))


# ----------------------------------------------------------------------------- 
# Path 2 / pass B: folded BN + MLP (parallel over tiles).
# -----------------------------------------------------------------------------
def _apply_kernel(x_ref, w1_ref, a_ref, b_ref, w2_ref, b2_ref, w3_ref, b3_ref,
                  o_ref, *, use_bf16):
    h1 = _mxu_dot(x_ref[...], w1_ref[...], use_bf16)
    h = jnp.maximum(h1 * a_ref[...] + b_ref[...], 0.0)        # folded BN + ReLU
    h = jnp.maximum(_mxu_dot(h, w2_ref[...], use_bf16) + b2_ref[...], 0.0)
    h = _mxu_dot(h, w3_ref[...], use_bf16) + b3_ref[...]
    o_ref[...] = jnp.maximum(h, 0.0).astype(o_ref.dtype)


def fnn_gad_nr_forward(emb, params, *, tile_rows=2048, use_bf16_matmul=False,
                       out_dtype=jnp.float32,
                       single_shot_vmem_bytes=20 * 1024 * 1024):
    (w1, b1, gamma, beta, w2, b2, w3, b3) = params
    del b1  # cancels exactly under BatchNorm's batch-mean subtraction
    n, in_dim = emb.shape
    hid_dim = w1.shape[1]
    out_dim = w3.shape[1]
    hid_pad = _round_up(hid_dim, LANE)
    out_pad = _round_up(out_dim, LANE)

    f32 = jnp.float32
    x = emb.astype(f32)
    w1_p = jnp.pad(w1.astype(f32), ((0, 0), (0, hid_pad - hid_dim)))
    g_p = jnp.pad(gamma.reshape(1, -1).astype(f32), ((0, 0), (0, hid_pad - hid_dim)))
    bt_p = jnp.pad(beta.reshape(1, -1).astype(f32), ((0, 0), (0, hid_pad - hid_dim)))
    w2_p = jnp.pad(w2.astype(f32), ((0, hid_pad - hid_dim), (0, out_pad - out_dim)))
    b2_p = jnp.pad(b2.reshape(1, -1).astype(f32), ((0, 0), (0, out_pad - out_dim)))
    w3_p = jnp.pad(w3.astype(f32), ((0, out_pad - out_dim), (0, out_pad - out_dim)))
    b3_p = jnp.pad(b3.reshape(1, -1).astype(f32), ((0, 0), (0, out_pad - out_dim)))

    weight_bytes = 4 * (w1_p.size + w2_p.size + w3_p.size + g_p.size + bt_p.size
                        + b2_p.size + b3_p.size)

    # ---- Path 1: single grid step -------------------------------------------
    single_bytes = 4 * n * (2 * in_dim + 2 * hid_pad + 3 * out_pad) + weight_bytes
    if single_bytes <= single_shot_vmem_bytes:
        full = lambda shape: pl.BlockSpec(shape, lambda i: (0, 0))
        out_full = pl.pallas_call(
            functools.partial(_fused_single_kernel, use_bf16=use_bf16_matmul),
            out_shape=jax.ShapeDtypeStruct((n, out_pad), out_dtype),
            grid=(1,),
            in_specs=[full((n, in_dim)), full((in_dim, hid_pad)),
                      full((1, hid_pad)), full((1, hid_pad)),
                      full((hid_pad, out_pad)), full((1, out_pad)),
                      full((out_pad, out_pad)), full((1, out_pad))],
            out_specs=full((n, out_pad)),
            compiler_params=pltpu.CompilerParams(
                dimension_semantics=("arbitrary",),
                vmem_limit_bytes=int(min(max(2 * single_bytes, 16 << 20), 48 << 20))),
        )(x, w1_p, g_p, bt_p, w2_p, b2_p, w3_p, b3_p)
        return out_full[:, :out_dim] if out_pad != out_dim else out_full

    # ---- Path 2: two megacore-parallel passes over row tiles -----------------
    tile_rows = _round_up(max(SUBLANE, min(tile_rows, n)), SUBLANE)
    num_tiles = pl.cdiv(n, tile_rows)
    x_spec = pl.BlockSpec((tile_rows, in_dim), lambda i: (i, 0))
    const = lambda shape: pl.BlockSpec(shape, lambda i: (0, 0))   # VMEM-resident

    # Pass A: partial sum / sum-of-squares of x @ W1 per row tile.
    stats_bytes = (4 * (2 * tile_rows * in_dim + tile_rows * hid_pad
                        + 2 * SUBLANE * hid_pad) + weight_bytes)
    stats = pl.pallas_call(
        functools.partial(_stats_kernel, n_valid=n, tile_rows=tile_rows,
                          use_bf16=use_bf16_matmul),
        out_shape=jax.ShapeDtypeStruct((num_tiles, SUBLANE, hid_pad), f32),
        grid=(num_tiles,),
        in_specs=[x_spec, const((in_dim, hid_pad))],
        out_specs=pl.BlockSpec((1, SUBLANE, hid_pad), lambda i: (i, 0, 0)),
        compiler_params=pltpu.CompilerParams(
            dimension_semantics=("parallel",),
            vmem_limit_bytes=int(min(max(2 * stats_bytes, 16 << 20), 48 << 20))),
    )(x, w1_p)

    # Fold BN constants once (tiny XLA compute on (hid_pad,) vectors).
    totals = jnp.sum(stats, axis=0)                       # (8, hid_pad)
    mean = totals[0] / n
    var = jnp.maximum(totals[1] / n - mean * mean, 0.0)   # biased variance
    # TODO(synk): switch to a shifted/Welford accumulation if E[x^2]-E[x]^2
    # cancellation ever matters for strongly non-centered activations.
    a_vec = g_p[0] * lax.rsqrt(var + BN_EPS)
    b_vec = bt_p[0] - mean * a_vec
    a_p = a_vec.reshape(1, hid_pad)
    b_p = b_vec.reshape(1, hid_pad)

    # Pass B: folded BN + remaining layers.
    apply_bytes = (4 * (2 * tile_rows * (in_dim + out_pad)
                        + tile_rows * (hid_pad + out_pad)) + weight_bytes)
    out_full = pl.pallas_call(
        functools.partial(_apply_kernel, use_bf16=use_bf16_matmul),
        out_shape=jax.ShapeDtypeStruct((n, out_pad), out_dtype),
        grid=(num_tiles,),
        in_specs=[x_spec, const((in_dim, hid_pad)), const((1, hid_pad)),
                  const((1, hid_pad)), const((hid_pad, out_pad)),
                  const((1, out_pad)), const((out_pad, out_pad)),
                  const((1, out_pad))],
        out_specs=pl.BlockSpec((tile_rows, out_pad), lambda i: (i, 0)),
        compiler_params=pltpu.CompilerParams(
            dimension_semantics=("parallel",),
            vmem_limit_bytes=int(min(max(2 * apply_bytes, 16 << 20), 48 << 20))),
    )(x, w1_p, a_p, b_p, w2_p, b2_p, w3_p, b3_p)
    return out_full[:, :out_dim] if out_pad != out_dim else out_full


def init_params(key, in_dim, hid_dim, out_dim):
    """Deterministic synthetic init (shapes match FNN_GAD_NR with num_layers=2)."""
    ks = jax.random.split(key, 6)
    w1 = jax.random.normal(ks[0], (in_dim, hid_dim), jnp.float32) * 0.1
    b1 = jax.random.normal(ks[1], (hid_dim,), jnp.float32) * 0.1
    gamma = jnp.ones((hid_dim,), jnp.float32)     # BatchNorm1d weight
    beta = jnp.zeros((hid_dim,), jnp.float32)     # BatchNorm1d bias
    w2 = jax.random.normal(ks[2], (hid_dim, out_dim), jnp.float32) * 0.1
    b2 = jax.random.normal(ks[3], (out_dim,), jnp.float32) * 0.1
    w3 = jax.random.normal(ks[4], (out_dim, out_dim), jnp.float32) * 0.1
    b3 = jax.random.normal(ks[5], (out_dim,), jnp.float32) * 0.1
    return (w1, b1, gamma, beta, w2, b2, w3, b3)


def reference_forward(emb, params):
    """Pure-JAX reference (mirrors the PyTorch forward in training mode)."""
    (w1, b1, gamma, beta, w2, b2, w3, b3) = params
    h = emb @ w1 + b1
    mean = jnp.mean(h, axis=0, keepdims=True)
    var = jnp.mean((h - mean) ** 2, axis=0, keepdims=True)
    h = (h - mean) / jnp.sqrt(var + BN_EPS) * gamma + beta
    h = jax.nn.relu(h)
    h = h @ w2 + b2
    h = jax.nn.relu(h)
    h = h @ w3 + b3
    return jax.nn.relu(h)


if __name__ == "__main__":
    N, IN_DIM, HID_DIM, OUT_DIM = 500, 16, 32, 16

    key = jax.random.PRNGKey(0)
    k_x, k_p, k_x2 = jax.random.split(key, 3)
    emb = jax.random.normal(k_x, (N, IN_DIM), jnp.float32)
    params = init_params(k_p, IN_DIM, HID_DIM, OUT_DIM)

    # Path 1: single fused grid step (small batch).
    out = fnn_gad_nr_forward(emb, params)
    out = jax.block_until_ready(out)
    ref = reference_forward(emb, params)
    assert out.shape == (N, OUT_DIM)
    assert jnp.allclose(out, ref, atol=1e-3, rtol=1e-3), "single-shot path mismatch"

    # Path 2: two-pass megacore-parallel kernels, forced; ragged last row tile.
    N2 = 2500
    emb2 = jax.random.normal(k_x2, (N2, IN_DIM), jnp.float32)
    out2 = fnn_gad_nr_forward(emb2, params, tile_rows=1024, single_shot_vmem_bytes=0)
    out2 = jax.block_until_ready(out2)
    ref2 = reference_forward(emb2, params)
    assert out2.shape == (N2, OUT_DIM)
    assert jnp.allclose(out2, ref2, atol=1e-3, rtol=1e-3), "two-pass path mismatch"

    print("KERNEL_OK")
</pallas_src>

<mosaic_0001>
module attributes {stable_mosaic.version = 11 : i64} {
  func.func @_fused_single_kernel(%arg0: i32, %arg1: memref<500x16xf32, #tpu.memory_space<vmem>>, %arg2: memref<16x128xf32, #tpu.memory_space<vmem>>, %arg3: memref<1x128xf32, #tpu.memory_space<vmem>>, %arg4: memref<1x128xf32, #tpu.memory_space<vmem>>, %arg5: memref<128x128xf32, #tpu.memory_space<vmem>>, %arg6: memref<1x128xf32, #tpu.memory_space<vmem>>, %arg7: memref<128x128xf32, #tpu.memory_space<vmem>>, %arg8: memref<1x128xf32, #tpu.memory_space<vmem>>, %arg9: memref<500x128xf32, #tpu.memory_space<vmem>>) attributes {dimension_semantics = [#tpu.dimension_semantics<arbitrary>], iteration_bounds = array<i64: 1>, scalar_prefetch = 0 : i64, scratch_operands = 0 : i64, tpu.core_type = #tpu.core_type<tc>, window_params = [{pipeline_mode = #tpu.pipeline_mode<synchronous>, transform_indices = @transform_0, window_bounds = array<i64: 500, 16>}, {pipeline_mode = #tpu.pipeline_mode<synchronous>, transform_indices = @transform_1, window_bounds = array<i64: 16, 128>}, {pipeline_mode = #tpu.pipeline_mode<synchronous>, transform_indices = @transform_2, window_bounds = array<i64: 1, 128>}, {pipeline_mode = #tpu.pipeline_mode<synchronous>, transform_indices = @transform_3, window_bounds = array<i64: 1, 128>}, {pipeline_mode = #tpu.pipeline_mode<synchronous>, transform_indices = @transform_4, window_bounds = array<i64: 128, 128>}, {pipeline_mode = #tpu.pipeline_mode<synchronous>, transform_indices = @transform_5, window_bounds = array<i64: 1, 128>}, {pipeline_mode = #tpu.pipeline_mode<synchronous>, transform_indices = @transform_6, window_bounds = array<i64: 128, 128>}, {pipeline_mode = #tpu.pipeline_mode<synchronous>, transform_indices = @transform_7, window_bounds = array<i64: 1, 128>}, {pipeline_mode = #tpu.pipeline_mode<synchronous>, transform_indices = @transform_8, window_bounds = array<i64: 500, 128>}]} {
    %c0 = arith.constant 0 : index
    %c0_0 = arith.constant 0 : index
    %0 = vector.load %arg1[%c0, %c0_0] : memref<500x16xf32, #tpu.memory_space<vmem>>, vector<500x16xf32>
    %c0_1 = arith.constant 0 : index
    %c0_2 = arith.constant 0 : index
    %1 = vector.load %arg2[%c0_1, %c0_2] : memref<16x128xf32, #tpu.memory_space<vmem>>, vector<16x128xf32>
    %cst = arith.constant dense<0.000000e+00> : vector<500x128xf32>
    %2 = tpu.matmul %0, %1, %cst {dimension_numbers = #tpu.dot_dimension_numbers<[1], [0], [0], [1], [0, 0, 1, 1], [], []>} : vector<500x16xf32>, vector<16x128xf32>, vector<500x128xf32> -> vector<500x128xf32>
    %cst_3 = arith.constant dense<0.000000e+00> : vector<128xf32>
    %3 = vector.multi_reduction <add>, %2, %cst_3 [0] : vector<500x128xf32> to vector<128xf32>
    %4 = vector.shape_cast %3 : vector<128xf32> to vector<1x128xf32>
    %cst_4 = arith.constant 2.000000e-03 : f32
    %5 = vector.broadcast %cst_4 : f32 to vector<1x128xf32>
    %6 = arith.mulf %4, %5 : vector<1x128xf32>
    %7 = vector.broadcast %6 : vector<1x128xf32> to vector<500x128xf32>
    %8 = arith.subf %2, %7 : vector<500x128xf32>
    %9 = arith.mulf %8, %8 : vector<500x128xf32>
    %cst_5 = arith.constant dense<0.000000e+00> : vector<128xf32>
    %10 = vector.multi_reduction <add>, %9, %cst_5 [0] : vector<500x128xf32> to vector<128xf32>
    %11 = vector.shape_cast %10 : vector<128xf32> to vector<1x128xf32>
    %cst_6 = arith.constant 2.000000e-03 : f32
    %12 = vector.broadcast %cst_6 : f32 to vector<1x128xf32>
    %13 = arith.mulf %11, %12 : vector<1x128xf32>
    %c0_7 = arith.constant 0 : index
    %c0_8 = arith.constant 0 : index
    %14 = vector.load %arg3[%c0_7, %c0_8] : memref<1x128xf32, #tpu.memory_space<vmem>>, vector<1x128xf32>
    %cst_9 = arith.constant 9.99999974E-6 : f32
    %15 = vector.broadcast %cst_9 : f32 to vector<1x128xf32>
    %16 = arith.addf %13, %15 : vector<1x128xf32>
    %17 = math.rsqrt %16 : vector<1x128xf32>
    %18 = arith.mulf %14, %17 : vector<1x128xf32>
    %19 = vector.broadcast %18 : vector<1x128xf32> to vector<500x128xf32>
    %20 = arith.mulf %8, %19 : vector<500x128xf32>
    %c0_10 = arith.constant 0 : index
    %c0_11 = arith.constant 0 : index
    %21 = vector.load %arg4[%c0_10, %c0_11] : memref<1x128xf32, #tpu.memory_space<vmem>>, vector<1x128xf32>
    %22 = vector.broadcast %21 : vector<1x128xf32> to vector<500x128xf32>
    %23 = arith.addf %20, %22 : vector<500x128xf32>
    %cst_12 = arith.constant 0.000000e+00 : f32
    %24 = vector.broadcast %cst_12 : f32 to vector<500x128xf32>
    %25 = arith.maximumf %23, %24 : vector<500x128xf32>
    %c0_13 = arith.constant 0 : index
    %c0_14 = arith.constant 0 : index
    %26 = vector.load %arg5[%c0_13, %c0_14] : memref<128x128xf32, #tpu.memory_space<vmem>>, vector<128x128xf32>
    %cst_15 = arith.constant dense<0.000000e+00> : vector<500x128xf32>
    %27 = tpu.matmul %25, %26, %cst_15 {dimension_numbers = #tpu.dot_dimension_numbers<[1], [0], [0], [1], [0, 0, 1, 1], [], []>} : vector<500x128xf32>, vector<128x128xf32>, vector<500x128xf32> -> vector<500x128xf32>
    %c0_16 = arith.constant 0 : index
    %c0_17 = arith.constant 0 : index
    %28 = vector.load %arg6[%c0_16, %c0_17] : memref<1x128xf32, #tpu.memory_space<vmem>>, vector<1x128xf32>
    %29 = vector.broadcast %28 : vector<1x128xf32> to vector<500x128xf32>
    %30 = arith.addf %27, %29 : vector<500x128xf32>
    %cst_18 = arith.constant 0.000000e+00 : f32
    %31 = vector.broadcast %cst_18 : f32 to vector<500x128xf32>
    %32 = arith.maximumf %30, %31 : vector<500x128xf32>
    %c0_19 = arith.constant 0 : index
    %c0_20 = arith.constant 0 : index
    %33 = vector.load %arg7[%c0_19, %c0_20] : memref<128x128xf32, #tpu.memory_space<vmem>>, vector<128x128xf32>
    %cst_21 = arith.constant dense<0.000000e+00> : vector<500x128xf32>
    %34 = tpu.matmul %32, %33, %cst_21 {dimension_numbers = #tpu.dot_dimension_numbers<[1], [0], [0], [1], [0, 0, 1, 1], [], []>} : vector<500x128xf32>, vector<128x128xf32>, vector<500x128xf32> -> vector<500x128xf32>
    %c0_22 = arith.constant 0 : index
    %c0_23 = arith.constant 0 : index
    %35 = vector.load %arg8[%c0_22, %c0_23] : memref<1x128xf32, #tpu.memory_space<vmem>>, vector<1x128xf32>
    %36 = vector.broadcast %35 : vector<1x128xf32> to vector<500x128xf32>
    %37 = arith.addf %34, %36 : vector<500x128xf32>
    %cst_24 = arith.constant 0.000000e+00 : f32
    %38 = vector.broadcast %cst_24 : f32 to vector<500x128xf32>
    %39 = arith.maximumf %37, %38 : vector<500x128xf32>
    %c0_25 = arith.constant 0 : index
    %c0_26 = arith.constant 0 : index
    %40 = vector.load %arg9[%c0_25, %c0_26] : memref<500x128xf32, #tpu.memory_space<vmem>>, vector<500x128xf32>
    tpu.vector_store %arg9[%c0_25, %c0_26], %39 {strides = array<i32>} : memref<500x128xf32, #tpu.memory_space<vmem>>, vector<500x128xf32>,
    return
  }
  func.func @transform_0(%arg0: i32) -> (i32, i32) {
    %c0_i32 = arith.constant 0 : i32
    %c0_i32_0 = arith.constant 0 : i32
    %c0_i32_1 = arith.constant 0 : i32
    return %c0_i32, %c0_i32_0 : i32, i32
  }
  func.func @transform_1(%arg0: i32) -> (i32, i32) {
    %c0_i32 = arith.constant 0 : i32
    %c0_i32_0 = arith.constant 0 : i32
    %c0_i32_1 = arith.constant 0 : i32
    return %c0_i32, %c0_i32_0 : i32, i32
  }
  func.func @transform_2(%arg0: i32) -> (i32, i32) {
    %c0_i32 = arith.constant 0 : i32
    %c0_i32_0 = arith.constant 0 : i32
    %c0_i32_1 = arith.constant 0 : i32
    return %c0_i32, %c0_i32_0 : i32, i32
  }
  func.func @transform_3(%arg0: i32) -> (i32, i32) {
    %c0_i32 = arith.constant 0 : i32
    %c0_i32_0 = arith.constant 0 : i32
    %c0_i32_1 = arith.constant 0 : i32
    return %c0_i32, %c0_i32_0 : i32, i32
  }
  func.func @transform_4(%arg0: i32) -> (i32, i32) {
    %c0_i32 = arith.constant 0 : i32
    %c0_i32_0 = arith.constant 0 : i32
    %c0_i32_1 = arith.constant 0 : i32
    return %c0_i32, %c0_i32_0 : i32, i32
  }
  func.func @transform_5(%arg0: i32) -> (i32, i32) {
    %c0_i32 = arith.constant 0 : i32
    %c0_i32_0 = arith.constant 0 : i32
    %c0_i32_1 = arith.constant 0 : i32
    return %c0_i32, %c0_i32_0 : i32, i32
  }
  func.func @transform_6(%arg0: i32) -> (i32, i32) {
    %c0_i32 = arith.constant 0 : i32
    %c0_i32_0 = arith.constant 0 : i32
    %c0_i32_1 = arith.constant 0 : i32
    return %c0_i32, %c0_i32_0 : i32, i32
  }
  func.func @transform_7(%arg0: i32) -> (i32, i32) {
    %c0_i32 = arith.constant 0 : i32
    %c0_i32_0 = arith.constant 0 : i32
    %c0_i32_1 = arith.constant 0 : i32
    return %c0_i32, %c0_i32_0 : i32, i32
  }
  func.func @transform_8(%arg0: i32) -> (i32, i32) {
    %c0_i32 = arith.constant 0 : i32
    %c0_i32_0 = arith.constant 0 : i32
    %c0_i32_1 = arith.constant 0 : i32
    return %c0_i32, %c0_i32_0 : i32, i32
  }
}

</mosaic_0001>

<llo_original>
// kernel: tpu_custom_call.1
$region0: #{tpu_custom_call.1}
  #allocation0 [shape = 'u32[]', space=smem, size = 0x4, offset = 0x4, fixed_abs, tag = 'smem constant byte address 0x4 - core index']
  #allocation1 [shape = 'u32[72,128]{1,0:T(1,128)}', space=vmem, size = 0x9000, scoped, tag = 'internal scratch']
  %s0 = inlined_call_operand.vmem [shape: f32[500,16], index: 0, kind: input, shape index: {}]
  %s1 = inlined_call_operand.vmem [shape: f32[16,128], index: 1, kind: input, shape index: {}]
  %s2 = inlined_call_operand.vmem [shape: f32[1,128], index: 2, kind: input, shape index: {}]
  %s3 = inlined_call_operand.vmem [shape: f32[1,128], index: 3, kind: input, shape index: {}]
  %s4 = inlined_call_operand.vmem [shape: f32[128,128], index: 4, kind: input, shape index: {}]
  %s5 = inlined_call_operand.vmem [shape: f32[1,128], index: 5, kind: input, shape index: {}]
  %s6 = inlined_call_operand.vmem [shape: f32[128,128], index: 6, kind: input, shape index: {}]
  %s7 = inlined_call_operand.vmem [shape: f32[1,128], index: 7, kind: input, shape index: {}]
  %s8 = inlined_call_operand.hbm [shape: f32[500,128], index: 8, kind: output, shape index: {}]
  %s9 = sld [smem:[#allocation0]]
  $region42: #{tpu_custom_call.1} parent=0
    _
  %s11 = ssub.s32 1, %s9
  %s12 = scalar_select 0, %s11, %s9
  $region1: #{tpu_custom_call.1} parent=0
    #allocation2 [shape = 'u8[258048]{0}', space=vmem, size = 0x3f000, scoped, tag = 'output window, operand 0, single buffered']
    #allocation3 [shape = 's32[1]{0}', space=sflag, size = 0x4, scoped, tag = 'scoped memory for tpu_custom_call.1']
    %13 = vsyncpa [#allocation3], 0
    // Predicated region
    $region2: #{tpu_custom_call.1} parent=1 // pred_check
      _
    $region3: #{tpu_custom_call.1} parent=1 // pred_check_branch
      %15 = sbr.rel (0) target = $region5
    $region4: #{tpu_custom_call.1} parent=1 // pred_region
      _
    $region5: #{tpu_custom_call.1} parent=1 // pred_fallthru
      _
    // Predicated region
    $region6: #{tpu_custom_call.1} parent=1 // pred_check
      _
    $region7: #{tpu_custom_call.1} parent=1 // pred_check_branch
      %17 = sbr.rel (0) target = $region9
    $region8: #{tpu_custom_call.1} parent=1 // pred_region
      _
    $region9: #{tpu_custom_call.1} parent=1 // pred_fallthru
      _
    // Predicated region
    $region10: #{tpu_custom_call.1} parent=1 // pred_check
      _
    $region11: #{tpu_custom_call.1} parent=1 // pred_check_branch
      %19 = sbr.rel (0) target = $region13
    $region12: #{tpu_custom_call.1} parent=1 // pred_region
      _
    $region13: #{tpu_custom_call.1} parent=1 // pred_fallthru
      _
    // Predicated region
    $region14: #{tpu_custom_call.1} parent=1 // pred_check
      _
    $region15: #{tpu_custom_call.1} parent=1 // pred_check_branch
      %21 = sbr.rel (0) target = $region17
    $region16: #{tpu_custom_call.1} parent=1 // pred_region
      _
    $region17: #{tpu_custom_call.1} parent=1 // pred_fallthru
      _
    // Predicated region
    $region18: #{tpu_custom_call.1} parent=1 // pred_check
      _
    $region19: #{tpu_custom_call.1} parent=1 // pred_check_branch
      %23 = sbr.rel (0) target = $region21
    $region20: #{tpu_custom_call.1} parent=1 // pred_region
      _
    $region21: #{tpu_custom_call.1} parent=1 // pred_fallthru
      _
    // Predicated region
    $region22: #{tpu_custom_call.1} parent=1 // pred_check
      _
    $region23: #{tpu_custom_call.1} parent=1 // pred_check_branch
      %25 = sbr.rel (0) target = $region25
    $region24: #{tpu_custom_call.1} parent=1 // pred_region
      _
    $region25: #{tpu_custom_call.1} parent=1 // pred_fallthru
      _
    // Predicated region
    $region26: #{tpu_custom_call.1} parent=1 // pred_check
      _
    $region27: #{tpu_custom_call.1} parent=1 // pred_check_branch
      %27 = sbr.rel (0) target = $region29
    $region28: #{tpu_custom_call.1} parent=1 // pred_region
      _
    $region29: #{tpu_custom_call.1} parent=1 // pred_fallthru
      _
    // Predicated region
    $region30: #{tpu_custom_call.1} parent=1 // pred_check
      _
    $region31: #{tpu_custom_call.1} parent=1 // pred_check_branch
      %29 = sbr.rel (0) target = $region33
    $region32: #{tpu_custom_call.1} parent=1 // pred_region
      _
    $region33: #{tpu_custom_call.1} parent=1 // pred_fallthru
      _
    %v30 = vld [vmem:[%s0] sm:$0xff]
    %v31 = vld [vmem:[%s0 + $0x8] sm:$0xff]
    %v32 = vld [vmem:[%s0 + $0x10] sm:$0xff]
    %v33 = vld [vmem:[%s0 + $0x18] sm:$0xff]
    %v34 = vld [vmem:[%s0 + $0x20] sm:$0xff]
    %v35 = vld [vmem:[%s0 + $0x28] sm:$0xff]
    %v36 = vld [vmem:[%s0 + $0x30] sm:$0xff]
    %v37 = vld [vmem:[%s0 + $0x38] sm:$0xff]
    %v38 = vld [vmem:[%s0 + $0x40] sm:$0xff]
    %v39 = vld [vmem:[%s0 + $0x48] sm:$0xff]
    %v40 = vld [vmem:[%s0 + $0x50] sm:$0xff]
    %v41 = vld [vmem:[%s0 + $0x58] sm:$0xff]
    %v42 = vld [vmem:[%s0 + $0x60] sm:$0xff]
    %v43 = vld [vmem:[%s0 + $0x68] sm:$0xff]
    %v44 = vld [vmem:[%s0 + $0x70] sm:$0xff]
    %v45 = vld [vmem:[%s0 + $0x78] sm:$0xff]
    %v46 = vld [vmem:[%s0 + $0x80] sm:$0xff]
    %v47 = vld [vmem:[%s0 + $0x88] sm:$0xff]
    %v48 = vld [vmem:[%s0 + $0x90] sm:$0xff]
    %v49 = vld [vmem:[%s0 + $0x98] sm:$0xff]
    %v50 = vld [vmem:[%s0 + $0xa0] sm:$0xff]
    %v51 = vld [vmem:[%s0 + $0xa8] sm:$0xff]
    %v52 = vld [vmem:[%s0 + $0xb0] sm:$0xff]
    %v53 = vld [vmem:[%s0 + $0xb8] sm:$0xff]
    %v54 = vld [vmem:[%s0 + $0xc0] sm:$0xff]
    %v55 = vld [vmem:[%s0 + $0xc8] sm:$0xff]
    %v56 = vld [vmem:[%s0 + $0xd0] sm:$0xff]
    %v57 = vld [vmem:[%s0 + $0xd8] sm:$0xff]
    %v58 = vld [vmem:[%s0 + $0xe0] sm:$0xff]
    %v59 = vld [vmem:[%s0 + $0xe8] sm:$0xff]
    %v60 = vld [vmem:[%s0 + $0xf0] sm:$0xff]
    %v61 = vld [vmem:[%s0 + $0xf8] sm:$0xff]
    %v62 = vld [vmem:[%s0 + $0x100] sm:$0xff]
    %v63 = vld [vmem:[%s0 + $0x108] sm:$0xff]
    %v64 = vld [vmem:[%s0 + $0x110] sm:$0xff]
    %v65 = vld [vmem:[%s0 + $0x118] sm:$0xff]
    %v66 = vld [vmem:[%s0 + $0x120] sm:$0xff]
    %v67 = vld [vmem:[%s0 + $0x128] sm:$0xff]
    %v68 = vld [vmem:[%s0 + $0x130] sm:$0xff]
    %v69 = vld [vmem:[%s0 + $0x138] sm:$0xff]
    %v70 = vld [vmem:[%s0 + $0x140] sm:$0xff]
    %v71 = vld [vmem:[%s0 + $0x148] sm:$0xff]
    %v72 = vld [vmem:[%s0 + $0x150] sm:$0xff]
    %v73 = vld [vmem:[%s0 + $0x158] sm:$0xff]
    %v74 = vld [vmem:[%s0 + $0x160] sm:$0xff]
    %v75 = vld [vmem:[%s0 + $0x168] sm:$0xff]
    %v76 = vld [vmem:[%s0 + $0x170] sm:$0xff]
    %v77 = vld [vmem:[%s0 + $0x178] sm:$0xff]
    %v78 = vld [vmem:[%s0 + $0x180] sm:$0xff]
    %v79 = vld [vmem:[%s0 + $0x188] sm:$0xff]
    %v80 = vld [vmem:[%s0 + $0x190] sm:$0xff]
    %v81 = vld [vmem:[%s0 + $0x198] sm:$0xff]
    %v82 = vld [vmem:[%s0 + $0x1a0] sm:$0xff]
    %v83 = vld [vmem:[%s0 + $0x1a8] sm:$0xff]
    %v84 = vld [vmem:[%s0 + $0x1b0] sm:$0xff]
    %v85 = vld [vmem:[%s0 + $0x1b8] sm:$0xff]
    %v86 = vld [vmem:[%s0 + $0x1c0] sm:$0xff]
    %v87 = vld [vmem:[%s0 + $0x1c8] sm:$0xff]
    %v88 = vld [vmem:[%s0 + $0x1d0] sm:$0xff]
    %v89 = vld [vmem:[%s0 + $0x1d8] sm:$0xff]
    %v90 = vld [vmem:[%s0 + $0x1e0] sm:$0xff]
    %v91 = vld [vmem:[%s0 + $0x1e8] sm:$0xff]
    %v92 = vld [vmem:[%s0 + $0x1f0] sm:$0xf]
    %v93 = vld [vmem:[%s1] sm:$0xff]
    %v94 = vld [vmem:[%s1 + $0x8] sm:$0xff]
    %vm95 = vcmask 130048
    %v97 = vsel %vm95, %v30, 0
    %v100 = vsel %vm95, %v31, 0
    %v103 = vsel %vm95, %v32, 0
    %v106 = vsel %vm95, %v33, 0
    %v109 = vsel %vm95, %v34, 0
    %v112 = vsel %vm95, %v35, 0
    %v115 = vsel %vm95, %v36, 0
    %v118 = vsel %vm95, %v37, 0
    %v121 = vsel %vm95, %v38, 0
    %v124 = vsel %vm95, %v39, 0
    %v127 = vsel %vm95, %v40, 0
    %v130 = vsel %vm95, %v41, 0
    %v133 = vsel %vm95, %v42, 0
    %v136 = vsel %vm95, %v43, 0
    %v139 = vsel %vm95, %v44, 0
    %v142 = vsel %vm95, %v45, 0
    %v145 = vsel %vm95, %v46, 0
    %v148 = vsel %vm95, %v47, 0
    %v151 = vsel %vm95, %v48, 0
    %v154 = vsel %vm95, %v49, 0
    %v157 = vsel %vm95, %v50, 0
    %v160 = vsel %vm95, %v51, 0
    %v163 = vsel %vm95, %v52, 0
    %v166 = vsel %vm95, %v53, 0
    %v169 = vsel %vm95, %v54, 0
    %v172 = vsel %vm95, %v55, 0
    %v175 = vsel %vm95, %v56, 0
    %v178 = vsel %vm95, %v57, 0
    %v181 = vsel %vm95, %v58, 0
    %v184 = vsel %vm95, %v59, 0
    %v187 = vsel %vm95, %v60, 0
    %v190 = vsel %vm95, %v61, 0
    %v193 = vsel %vm95, %v62, 0
    %v196 = vsel %vm95, %v63, 0
    %v199 = vsel %vm95, %v64, 0
    %v202 = vsel %vm95, %v65, 0
    %v205 = vsel %vm95, %v66, 0
    %v208 = vsel %vm95, %v67, 0
    %v211 = vsel %vm95, %v68, 0
    %v214 = vsel %vm95, %v69, 0
    %v217 = vsel %vm95, %v70, 0
    %v220 = vsel %vm95, %v71, 0
    %v223 = vsel %vm95, %v72, 0
    %v226 = vsel %vm95, %v73, 0
    %v229 = vsel %vm95, %v74, 0
    %v232 = vsel %vm95, %v75, 0
    %v235 = vsel %vm95, %v76, 0
    %v238 = vsel %vm95, %v77, 0
    %v241 = vsel %vm95, %v78, 0
    %v244 = vsel %vm95, %v79, 0
    %v247 = vsel %vm95, %v80, 0
    %v250 = vsel %vm95, %v81, 0
    %v253 = vsel %vm95, %v82, 0
    %v256 = vsel %vm95, %v83, 0
    %v259 = vsel %vm95, %v84, 0
    %v262 = vsel %vm95, %v85, 0
    %v265 = vsel %vm95, %v86, 0
    %v268 = vsel %vm95, %v87, 0
    %v271 = vsel %vm95, %v88, 0
    %v274 = vsel %vm95, %v89, 0
    %v277 = vsel %vm95, %v90, 0
    %v280 = vsel %vm95, %v91, 0
    %v283 = vsel %vm95, %v92, 0
    %285 = vmatpush.msra.mxu0 0.0
    %286 = vmatpush.msra.mxu0 0.0
    %287 = vmatpush.msra.mxu0 0.0
    %288 = vmatpush.msra.mxu0 0.0
    %289 = vmatpush.msra.mxu0 0.0
    %290 = vmatpush.msra.mxu0 0.0
    %291 = vmatpush.msra.mxu0 0.0
    %292 = vmatpush.msra.mxu0 0.0
    %293 = vmatpush.msra.mxu0 0.0
    %294 = vmatpush.msra.mxu0 0.0
    %295 = vmatpush.msra.mxu0 0.0
    %296 = vmatpush.msra.mxu0 0.0
    %297 = vmatpush.msra.mxu0 0.0
    %298 = vmatpush.msra.mxu0 0.0
    %299 = vmatpush.msra.mxu0 %v94
    %300 = vmatpush.msra.mxu0 %v93
    %301 = vmatmul.f32.gmra.mxu0 %v97
    %v302 = vpop.f32.mrf.mxu0
    %v303 = vadd.f32 0.0, %v302
    %304 = vmatmul.f32.gmra.mxu0 %v100
    %v305 = vpop.f32.mrf.mxu0
    %v306 = vadd.f32 0.0, %v305
    %307 = vmatmul.f32.gmra.mxu0 %v103
    %v308 = vpop.f32.mrf.mxu0
    %v309 = vadd.f32 0.0, %v308
    %310 = vmatmul.f32.gmra.mxu0 %v106
    %v311 = vpop.f32.mrf.mxu0
    %v312 = vadd.f32 0.0, %v311
    %313 = vmatmul.f32.gmra.mxu0 %v109
    %v314 = vpop.f32.mrf.mxu0
    %v315 = vadd.f32 0.0, %v314
    %316 = vmatmul.f32.gmra.mxu0 %v112
    %v317 = vpop.f32.mrf.mxu0
    %v318 = vadd.f32 0.0, %v317
    %319 = vmatmul.f32.gmra.mxu0 %v115
    %v320 = vpop.f32.mrf.mxu0
    %v321 = vadd.f32 0.0, %v320
    %322 = vmatmul.f32.gmra.mxu0 %v118
    %v323 = vpop.f32.mrf.mxu0
    %v324 = vadd.f32 0.0, %v323
    %325 = vmatmul.f32.gmra.mxu0 %v121
    %v326 = vpop.f32.mrf.mxu0
    %v327 = vadd.f32 0.0, %v326
    %328 = vmatmul.f32.gmra.mxu0 %v124
    %v329 = vpop.f32.mrf.mxu0
    %v330 = vadd.f32 0.0, %v329
    %331 = vmatmul.f32.gmra.mxu0 %v127
    %v332 = vpop.f32.mrf.mxu0
    %v333 = vadd.f32 0.0, %v332
    %334 = vmatmul.f32.gmra.mxu0 %v130
    %v335 = vpop.f32.mrf.mxu0
    %v336 = vadd.f32 0.0, %v335
    %337 = vmatmul.f32.gmra.mxu0 %v133
    %v338 = vpop.f32.mrf.mxu0
    %v339 = vadd.f32 0.0, %v338
    %340 = vmatmul.f32.gmra.mxu0 %v136
    %v341 = vpop.f32.mrf.mxu0
    %v342 = vadd.f32 0.0, %v341
    %343 = vmatmul.f32.gmra.mxu0 %v139
    %v344 = vpop.f32.mrf.mxu0
    %v345 = vadd.f32 0.0, %v344
    %346 = vmatmul.f32.gmra.mxu0 %v142
    %v347 = vpop.f32.mrf.mxu0
    %v348 = vadd.f32 0.0, %v347
    %349 = vmatmul.f32.gmra.mxu0 %v145
    %v350 = vpop.f32.mrf.mxu0
    %v351 = vadd.f32 0.0, %v350
    %352 = vmatmul.f32.gmra.mxu0 %v148
    %v353 = vpop.f32.mrf.mxu0
    %v354 = vadd.f32 0.0, %v353
    %355 = vmatmul.f32.gmra.mxu0 %v151
    %v356 = vpop.f32.mrf.mxu0
    %v357 = vadd.f32 0.0, %v356
    %358 = vmatmul.f32.gmra.mxu0 %v154
    %v359 = vpop.f32.mrf.mxu0
    %v360 = vadd.f32 0.0, %v359
    %361 = vmatmul.f32.gmra.mxu0 %v157
    %v362 = vpop.f32.mrf.mxu0
    %v363 = vadd.f32 0.0, %v362
    %364 = vmatmul.f32.gmra.mxu0 %v160
    %v365 = vpop.f32.mrf.mxu0
    %v366 = vadd.f32 0.0, %v365
    %367 = vmatmul.f32.gmra.mxu0 %v163
    %v368 = vpop.f32.mrf.mxu0
    %v369 = vadd.f32 0.0, %v368
    %370 = vmatmul.f32.gmra.mxu0 %v166
    %v371 = vpop.f32.mrf.mxu0
    %v372 = vadd.f32 0.0, %v371
    %373 = vmatmul.f32.gmra.mxu0 %v169
    %v374 = vpop.f32.mrf.mxu0
    %v375 = vadd.f32 0.0, %v374
    %376 = vmatmul.f32.gmra.mxu0 %v172
    %v377 = vpop.f32.mrf.mxu0
    %v378 = vadd.f32 0.0, %v377
    %379 = vmatmul.f32.gmra.mxu0 %v175
    %v380 = vpop.f32.mrf.mxu0
    %v381 = vadd.f32 0.0, %v380
    %382 = vmatmul.f32.gmra.mxu0 %v178
    %v383 = vpop.f32.mrf.mxu0
    %v384 = vadd.f32 0.0, %v383
    %385 = vmatmul.f32.gmra.mxu0 %v181
    %v386 = vpop.f32.mrf.mxu0
    %v387 = vadd.f32 0.0, %v386
    %388 = vmatmul.f32.gmra.mxu0 %v184
    %v389 = vpop.f32.mrf.mxu0
    %v390 = vadd.f32 0.0, %v389
    %391 = vmatmul.f32.gmra.mxu0 %v187
    %v392 = vpop.f32.mrf.mxu0
    %v393 = vadd.f32 0.0, %v392
    %394 = vmatmul.f32.gmra.mxu0 %v190
    %v395 = vpop.f32.mrf.mxu0
    %v396 = vadd.f32 0.0, %v395
    %397 = vmatmul.f32.gmra.mxu0 %v193
    %v398 = vpop.f32.mrf.mxu0
    %v399 = vadd.f32 0.0, %v398
    %400 = vmatmul.f32.gmra.mxu0 %v196
    %v401 = vpop.f32.mrf.mxu0
    %v402 = vadd.f32 0.0, %v401
    %403 = vmatmul.f32.gmra.mxu0 %v199
    %v404 = vpop.f32.mrf.mxu0
    %v405 = vadd.f32 0.0, %v404
    %406 = vmatmul.f32.gmra.mxu0 %v202
    %v407 = vpop.f32.mrf.mxu0
    %v408 = vadd.f32 0.0, %v407
    %409 = vmatmul.f32.gmra.mxu0 %v205
    %v410 = vpop.f32.mrf.mxu0
    %v411 = vadd.f32 0.0, %v410
    %412 = vmatmul.f32.gmra.mxu0 %v208
    %v413 = vpop.f32.mrf.mxu0
    %v414 = vadd.f32 0.0, %v413
    %415 = vmatmul.f32.gmra.mxu0 %v211
    %v416 = vpop.f32.mrf.mxu0
    %v417 = vadd.f32 0.0, %v416
    %418 = vmatmul.f32.gmra.mxu0 %v214
    %v419 = vpop.f32.mrf.mxu0
    %v420 = vadd.f32 0.0, %v419
    %421 = vmatmul.f32.gmra.mxu0 %v217
    %v422 = vpop.f32.mrf.mxu0
    %v423 = vadd.f32 0.0, %v422
    %424 = vmatmul.f32.gmra.mxu0 %v220
    %v425 = vpop.f32.mrf.mxu0
    %v426 = vadd.f32 0.0, %v425
    %427 = vmatmul.f32.gmra.mxu0 %v223
    %v428 = vpop.f32.mrf.mxu0
    %v429 = vadd.f32 0.0, %v428
    %430 = vmatmul.f32.gmra.mxu0 %v226
    %v431 = vpop.f32.mrf.mxu0
    %v432 = vadd.f32 0.0, %v431
    %433 = vmatmul.f32.gmra.mxu0 %v229
    %v434 = vpop.f32.mrf.mxu0
    %v435 = vadd.f32 0.0, %v434
    %436 = vmatmul.f32.gmra.mxu0 %v232
    %v437 = vpop.f32.mrf.mxu0
    %v438 = vadd.f32 0.0, %v437
    %439 = vmatmul.f32.gmra.mxu0 %v235
    %v440 = vpop.f32.mrf.mxu0
    %v441 = vadd.f32 0.0, %v440
    %442 = vmatmul.f32.gmra.mxu0 %v238
    %v443 = vpop.f32.mrf.mxu0
    %v444 = vadd.f32 0.0, %v443
    %445 = vmatmul.f32.gmra.mxu0 %v241
    %v446 = vpop.f32.mrf.mxu0
    %v447 = vadd.f32 0.0, %v446
    %448 = vmatmul.f32.gmra.mxu0 %v244
    %v449 = vpop.f32.mrf.mxu0
    %v450 = vadd.f32 0.0, %v449
    %451 = vmatmul.f32.gmra.mxu0 %v247
    %v452 = vpop.f32.mrf.mxu0
    %v453 = vadd.f32 0.0, %v452
    %454 = vmatmul.f32.gmra.mxu0 %v250
    %v455 = vpop.f32.mrf.mxu0
    %v456 = vadd.f32 0.0, %v455
    %457 = vmatmul.f32.gmra.mxu0 %v253
    %v458 = vpop.f32.mrf.mxu0
    %v459 = vadd.f32 0.0, %v458
    %460 = vmatmul.f32.gmra.mxu0 %v256
    %v461 = vpop.f32.mrf.mxu0
    %v462 = vadd.f32 0.0, %v461
    %463 = vmatmul.f32.gmra.mxu0 %v259
    %v464 = vpop.f32.mrf.mxu0
    %v465 = vadd.f32 0.0, %v464
    %466 = vmatmul.f32.gmra.mxu0 %v262
    %v467 = vpop.f32.mrf.mxu0
    %v468 = vadd.f32 0.0, %v467
    %469 = vmatmul.f32.gmra.mxu0 %v265
    %v470 = vpop.f32.mrf.mxu0
    %v471 = vadd.f32 0.0, %v470
    %472 = vmatmul.f32.gmra.mxu0 %v268
    %v473 = vpop.f32.mrf.mxu0
    %v474 = vadd.f32 0.0, %v473
    %475 = vmatmul.f32.gmra.mxu0 %v271
    %v476 = vpop.f32.mrf.mxu0
    %v477 = vadd.f32 0.0, %v476
    %478 = vmatmul.f32.gmra.mxu0 %v274
    %v479 = vpop.f32.mrf.mxu0
    %v480 = vadd.f32 0.0, %v479
    %481 = vmatmul.f32.gmra.mxu0 %v277
    %v482 = vpop.f32.mrf.mxu0
    %v483 = vadd.f32 0.0, %v482
    %484 = vmatmul.f32.gmra.mxu0 %v280
    %v485 = vpop.f32.mrf.mxu0
    %v486 = vadd.f32 0.0, %v485
    %487 = vmatmul.f32.gmra.mxu0 %v283
    %v488 = vpop.f32.mrf.mxu0
    %v489 = vadd.f32 0.0, %v488
    %490 = vdwg.mxu0
    %v491 = vadd.f32 %v303, %v306
    %v492 = vadd.f32 %v491, %v309
    %v493 = vadd.f32 %v492, %v312
    %v494 = vadd.f32 %v493, %v315
    %v495 = vadd.f32 %v494, %v318
    %v496 = vadd.f32 %v495, %v321
    %v497 = vadd.f32 %v496, %v324
    %v498 = vadd.f32 %v497, %v327
    %v499 = vadd.f32 %v498, %v330
    %v500 = vadd.f32 %v499, %v333
    %v501 = vadd.f32 %v500, %v336
    %v502 = vadd.f32 %v501, %v339
    %v503 = vadd.f32 %v502, %v342
    %v504 = vadd.f32 %v503, %v345
    %v505 = vadd.f32 %v504, %v348
    %v506 = vadd.f32 %v505, %v351
    %v507 = vadd.f32 %v506, %v354
    %v508 = vadd.f32 %v507, %v357
    %v509 = vadd.f32 %v508, %v360
    %v510 = vadd.f32 %v509, %v363
    %v511 = vadd.f32 %v510, %v366
    %v512 = vadd.f32 %v511, %v369
    %v513 = vadd.f32 %v512, %v372
    %v514 = vadd.f32 %v513, %v375
    %v515 = vadd.f32 %v514, %v378
    %v516 = vadd.f32 %v515, %v381
    %v517 = vadd.f32 %v516, %v384
    %v518 = vadd.f32 %v517, %v387
    %v519 = vadd.f32 %v518, %v390
    %v520 = vadd.f32 %v519, %v393
    %v521 = vadd.f32 %v520, %v396
    %v522 = vadd.f32 %v521, %v399
    %v523 = vadd.f32 %v522, %v402
    %v524 = vadd.f32 %v523, %v405
    %v525 = vadd.f32 %v524, %v408
    %v526 = vadd.f32 %v525, %v411
    %v527 = vadd.f32 %v526, %v414
    %v528 = vadd.f32 %v527, %v417
    %v529 = vadd.f32 %v528, %v420
    %v530 = vadd.f32 %v529, %v423
    %v531 = vadd.f32 %v530, %v426
    %v532 = vadd.f32 %v531, %v429
    %v533 = vadd.f32 %v532, %v432
    %v534 = vadd.f32 %v533, %v435
    %v535 = vadd.f32 %v534, %v438
    %v536 = vadd.f32 %v535, %v441
    %v537 = vadd.f32 %v536, %v444
    %v538 = vadd.f32 %v537, %v447
    %v539 = vadd.f32 %v538, %v450
    %v540 = vadd.f32 %v539, %v453
    %v541 = vadd.f32 %v540, %v456
    %v542 = vadd.f32 %v541, %v459
    %v543 = vadd.f32 %v542, %v462
    %v544 = vadd.f32 %v543, %v465
    %v545 = vadd.f32 %v544, %v468
    %v546 = vadd.f32 %v545, %v471
    %v547 = vadd.f32 %v546, %v474
    %v548 = vadd.f32 %v547, %v477
    %v549 = vadd.f32 %v548, %v480
    %v550 = vadd.f32 %v549, %v483
    %v551 = vadd.f32 %v550, %v486
    %vm552 = vcmask 1043456
    %v553 = vsel %vm552, %v489, 0.0
    %v554 = vadd.f32 %v551, %v553
    %v555 = vrot.slane %v554, 4
    %v556 = vadd.f32 %v554, %v555
    %v557 = vrot.slane %v556, 2
    %v558 = vadd.f32 %v556, %v557
    %v559 = vrot.slane %v558, 1
    %v560 = vadd.f32 %v558, %v559
    %v561 = vmul.f32 %v560, 0.002
    %v562 = vsub.f32 %v303, %v561
    %v563 = vsub.f32 %v306, %v561
    %v564 = vsub.f32 %v309, %v561
    %v565 = vsub.f32 %v312, %v561
    %v566 = vsub.f32 %v315, %v561
    %v567 = vsub.f32 %v318, %v561
    %v568 = vsub.f32 %v321, %v561
    %v569 = vsub.f32 %v324, %v561
    %v570 = vsub.f32 %v327, %v561
    %v571 = vsub.f32 %v330, %v561
    %v572 = vsub.f32 %v333, %v561
    %v573 = vsub.f32 %v336, %v561
    %v574 = vsub.f32 %v339, %v561
    %v575 = vsub.f32 %v342, %v561
    %v576 = vsub.f32 %v345, %v561
    %v577 = vsub.f32 %v348, %v561
    %v578 = vsub.f32 %v351, %v561
    %v579 = vsub.f32 %v354, %v561
    %v580 = vsub.f32 %v357, %v561
    %v581 = vsub.f32 %v360, %v561
    %v582 = vsub.f32 %v363, %v561
    %v583 = vsub.f32 %v366, %v561
    %v584 = vsub.f32 %v369, %v561
    %v585 = vsub.f32 %v372, %v561
    %v586 = vsub.f32 %v375, %v561
    %v587 = vsub.f32 %v378, %v561
    %v588 = vsub.f32 %v381, %v561
    %v589 = vsub.f32 %v384, %v561
    %v590 = vsub.f32 %v387, %v561
    %v591 = vsub.f32 %v390, %v561
    %v592 = vsub.f32 %v393, %v561
    %v593 = vsub.f32 %v396, %v561
    %v594 = vsub.f32 %v399, %v561
    %v595 = vsub.f32 %v402, %v561
    %v596 = vsub.f32 %v405, %v561
    %v597 = vsub.f32 %v408, %v561
    %v598 = vsub.f32 %v411, %v561
    %v599 = vsub.f32 %v414, %v561
    %v600 = vsub.f32 %v417, %v561
    %v601 = vsub.f32 %v420, %v561
    %v602 = vsub.f32 %v423, %v561
    %v603 = vsub.f32 %v426, %v561
    %v604 = vsub.f32 %v429, %v561
    %v605 = vsub.f32 %v432, %v561
    %v606 = vsub.f32 %v435, %v561
    %v607 = vsub.f32 %v438, %v561
    %v608 = vsub.f32 %v441, %v561
    %v609 = vsub.f32 %v444, %v561
    %v610 = vsub.f32 %v447, %v561
    %v611 = vsub.f32 %v450, %v561
    %v612 = vsub.f32 %v453, %v561
    %v613 = vsub.f32 %v456, %v561
    %v614 = vsub.f32 %v459, %v561
    %v615 = vsub.f32 %v462, %v561
    %v616 = vsub.f32 %v465, %v561
    %v617 = vsub.f32 %v468, %v561
    %v618 = vsub.f32 %v471, %v561
    %v619 = vsub.f32 %v474, %v561
    %v620 = vsub.f32 %v477, %v561
    %v621 = vsub.f32 %v480, %v561
    %v622 = vsub.f32 %v483, %v561
    %v623 = vsub.f32 %v486, %v561
    %v624 = vsub.f32 %v489, %v561
    %v625 = vmul.f32 %v562, %v562
    %v626 = vmul.f32 %v563, %v563
    %v627 = vmul.f32 %v564, %v564
    %v628 = vmul.f32 %v565, %v565
    %v629 = vmul.f32 %v566, %v566
    %v630 = vmul.f32 %v567, %v567
    %v631 = vmul.f32 %v568, %v568
    %v632 = vmul.f32 %v569, %v569
    %v633 = vmul.f32 %v570, %v570
    %v634 = vmul.f32 %v571, %v571
    %v635 = vmul.f32 %v572, %v572
    %v636 = vmul.f32 %v573, %v573
    %v637 = vmul.f32 %v574, %v574
    %v638 = vmul.f32 %v575, %v575
    %v639 = vmul.f32 %v576, %v576
    %v640 = vmul.f32 %v577, %v577
    %v641 = vmul.f32 %v578, %v578
    %v642 = vmul.f32 %v579, %v579
    %v643 = vmul.f32 %v580, %v580
    %v644 = vmul.f32 %v581, %v581
    %v645 = vmul.f32 %v582, %v582
    %v646 = vmul.f32 %v583, %v583
    %v647 = vmul.f32 %v584, %v584
    %v648 = vmul.f32 %v585, %v585
    %v649 = vmul.f32 %v586, %v586
    %v650 = vmul.f32 %v587, %v587
    %v651 = vmul.f32 %v588, %v588
    %v652 = vmul.f32 %v589, %v589
    %v653 = vmul.f32 %v590, %v590
    %v654 = vmul.f32 %v591, %v591
    %v655 = vmul.f32 %v592, %v592
    %v656 = vmul.f32 %v593, %v593
    %v657 = vmul.f32 %v594, %v594
    %v658 = vmul.f32 %v595, %v595
    %v659 = vmul.f32 %v596, %v596
    %v660 = vmul.f32 %v597, %v597
    %v661 = vmul.f32 %v598, %v598
    %v662 = vmul.f32 %v599, %v599
    %v663 = vmul.f32 %v600, %v600
    %v664 = vmul.f32 %v601, %v601
    %v665 = vmul.f32 %v602, %v602
    %v666 = vmul.f32 %v603, %v603
    %v667 = vmul.f32 %v604, %v604
    %v668 = vmul.f32 %v605, %v605
    %v669 = vmul.f32 %v606, %v606
    %v670 = vmul.f32 %v607, %v607
    %v671 = vmul.f32 %v608, %v608
    %v672 = vmul.f32 %v609, %v609
    %v673 = vmul.f32 %v610, %v610
    %v674 = vmul.f32 %v611, %v611
    %v675 = vmul.f32 %v612, %v612
    %v676 = vmul.f32 %v613, %v613
    %v677 = vmul.f32 %v614, %v614
    %v678 = vmul.f32 %v615, %v615
    %v679 = vmul.f32 %v616, %v616
    %v680 = vmul.f32 %v617, %v617
    %v681 = vmul.f32 %v618, %v618
    %v682 = vmul.f32 %v619, %v619
    %v683 = vmul.f32 %v620, %v620
    %v684 = vmul.f32 %v621, %v621
    %v685 = vmul.f32 %v622, %v622
    %v686 = vmul.f32 %v623, %v623
    %v687 = vmul.f32 %v624, %v624
    %v688 = vadd.f32 %v625, %v626
    %v689 = vadd.f32 %v688, %v627
    %v690 = vadd.f32 %v689, %v628
    %v691 = vadd.f32 %v690, %v629
    %v692 = vadd.f32 %v691, %v630
    %v693 = vadd.f32 %v692, %v631
    %v694 = vadd.f32 %v693, %v632
    %v695 = vadd.f32 %v694, %v633
    %v696 = vadd.f32 %v695, %v634
    %v697 = vadd.f32 %v696, %v635
    %v698 = vadd.f32 %v697, %v636
    %v699 = vadd.f32 %v698, %v637
    %v700 = vadd.f32 %v699, %v638
    %v701 = vadd.f32 %v700, %v639
    %v702 = vadd.f32 %v701, %v640
    %v703 = vadd.f32 %v702, %v641
    %v704 = vadd.f32 %v703, %v642
    %v705 = vadd.f32 %v704, %v643
    %v706 = vadd.f32 %v705, %v644
    %v707 = vadd.f32 %v706, %v645
    %v708 = vadd.f32 %v707, %v646
    %v709 = vadd.f32 %v708, %v647
    %v710 = vadd.f32 %v709, %v648
    %v711 = vadd.f32 %v710, %v649
    %v712 = vadd.f32 %v711, %v650
    %v713 = vadd.f32 %v712, %v651
    %v714 = vadd.f32 %v713, %v652
    %v715 = vadd.f32 %v714, %v653
    %v716 = vadd.f32 %v715, %v654
    %v717 = vadd.f32 %v716, %v655
    %v718 = vadd.f32 %v717, %v656
    %v719 = vadd.f32 %v718, %v657
    %v720 = vadd.f32 %v719, %v658
    %v721 = vadd.f32 %v720, %v659
    %v722 = vadd.f32 %v721, %v660
    %v723 = vadd.f32 %v722, %v661
    %v724 = vadd.f32 %v723, %v662
    %v725 = vadd.f32 %v724, %v663
    %v726 = vadd.f32 %v725, %v664
    %v727 = vadd.f32 %v726, %v665
    %v728 = vadd.f32 %v727, %v666
    %v729 = vadd.f32 %v728, %v667
    %v730 = vadd.f32 %v729, %v668
    %v731 = vadd.f32 %v730, %v669
    %v732 = vadd.f32 %v731, %v670
    %v733 = vadd.f32 %v732, %v671
    %v734 = vadd.f32 %v733, %v672
    %v735 = vadd.f32 %v734, %v673
    %v736 = vadd.f32 %v735, %v674
    %v737 = vadd.f32 %v736, %v675
    %v738 = vadd.f32 %v737, %v676
    %v739 = vadd.f32 %v738, %v677
    %v740 = vadd.f32 %v739, %v678
    %v741 = vadd.f32 %v740, %v679
    %v742 = vadd.f32 %v741, %v680
    %v743 = vadd.f32 %v742, %v681
    %v744 = vadd.f32 %v743, %v682
    %v745 = vadd.f32 %v744, %v683
    %v746 = vadd.f32 %v745, %v684
    %v747 = vadd.f32 %v746, %v685
    %v748 = vadd.f32 %v747, %v686
    %v749 = vsel %vm552, %v687, 0.0
    %v750 = vadd.f32 %v748, %v749
    %v751 = vrot.slane %v750, 4
    %v752 = vadd.f32 %v750, %v751
    %v753 = vrot.slane %v752, 2
    %v754 = vadd.f32 %v752, %v753
    %v755 = vrot.slane %v754, 1
    %v756 = vadd.f32 %v754, %v755
    %v757 = vmul.f32 %v756, 0.002
    %v758 = vld [vmem:[%s2] sm:$0x1]
    %v759 = vadd.f32 %v757, 1e-05
    %v760 = vrsqrt.pop %v759
    %v761 = vmul.f32 %v760, %v759
    %v762 = vmul.f32 %v761, %v760
    %v763 = vmul.f32 0.5, %v762
    %v764 = vsub.f32 1.5, %v763
    %v765 = vmul.f32 %v760, %v764
    %vm766 = vweird.f32 %v759
    %vm767 = vweird.f32 %v760
    %vm768 = vmor %vm766, %vm767
    %v769 = vsel %vm768, %v760, %v765
    %v770 = vmul.f32 %v758, %v769
    %v772 = vperm.slane %v770, 0
    %v774 = vmul.f32 %v562, %v772
    %v775 = vmul.f32 %v563, %v772
    %v776 = vmul.f32 %v564, %v772
    %v777 = vmul.f32 %v565, %v772
    %v778 = vmul.f32 %v566, %v772
    %v779 = vmul.f32 %v567, %v772
    %v780 = vmul.f32 %v568, %v772
    %v781 = vmul.f32 %v569, %v772
    %v782 = vmul.f32 %v570, %v772
    %v783 = vmul.f32 %v571, %v772
    %v784 = vmul.f32 %v572, %v772
    %v785 = vmul.f32 %v573, %v772
    %v786 = vmul.f32 %v574, %v772
    %v787 = vmul.f32 %v575, %v772
    %v788 = vmul.f32 %v576, %v772
    %v789 = vmul.f32 %v577, %v772
    %v790 = vmul.f32 %v578, %v772
    %v791 = vmul.f32 %v579, %v772
    %v792 = vmul.f32 %v580, %v772
    %v793 = vmul.f32 %v581, %v772
    %v794 = vmul.f32 %v582, %v772
    %v795 = vmul.f32 %v583, %v772
    %v796 = vmul.f32 %v584, %v772
    %v797 = vmul.f32 %v585, %v772
    %v798 = vmul.f32 %v586, %v772
    %v799 = vmul.f32 %v587, %v772
    %v800 = vmul.f32 %v588, %v772
    %v801 = vmul.f32 %v589, %v772
    %v802 = vmul.f32 %v590, %v772
    %v803 = vmul.f32 %v591, %v772
    %v804 = vmul.f32 %v592, %v772
    %v805 = vmul.f32 %v593, %v772
    %v806 = vmul.f32 %v594, %v772
    %v807 = vmul.f32 %v595, %v772
    %v808 = vmul.f32 %v596, %v772
    %v809 = vmul.f32 %v597, %v772
    %v810 = vmul.f32 %v598, %v772
    %v811 = vmul.f32 %v599, %v772
    %v812 = vmul.f32 %v600, %v772
    %v813 = vmul.f32 %v601, %v772
    %v814 = vmul.f32 %v602, %v772
    %v815 = vmul.f32 %v603, %v772
    %v816 = vmul.f32 %v604, %v772
    %v817 = vmul.f32 %v605, %v772
    %v818 = vmul.f32 %v606, %v772
    %v819 = vmul.f32 %v607, %v772
    %v820 = vmul.f32 %v608, %v772
    %v821 = vmul.f32 %v609, %v772
    %v822 = vmul.f32 %v610, %v772
    %v823 = vmul.f32 %v611, %v772
    %v824 = vmul.f32 %v612, %v772
    %v825 = vmul.f32 %v613, %v772
    %v826 = vmul.f32 %v614, %v772
    %v827 = vmul.f32 %v615, %v772
    %v828 = vmul.f32 %v616, %v772
    %v829 = vmul.f32 %v617, %v772
    %v830 = vmul.f32 %v618, %v772
    %v831 = vmul.f32 %v619, %v772
    %v832 = vmul.f32 %v620, %v772
    %v833 = vmul.f32 %v621, %v772
    %v834 = vmul.f32 %v622, %v772
    %v835 = vmul.f32 %v623, %v772
    %v836 = vmul.f32 %v624, %v772
    %v837 = vld [vmem:[%s3] sm:$0x1]
    %v839 = vperm.slane %v837, 0
    %v841 = vadd.f32 %v774, %v839
    %v842 = vadd.f32 %v775, %v839
    %v843 = vadd.f32 %v776, %v839
    %v844 = vadd.f32 %v777, %v839
    %v845 = vadd.f32 %v778, %v839
    %v846 = vadd.f32 %v779, %v839
    %v847 = vadd.f32 %v780, %v839
    %v848 = vadd.f32 %v781, %v839
    %v849 = vadd.f32 %v782, %v839
    %v850 = vadd.f32 %v783, %v839
    %v851 = vadd.f32 %v784, %v839
    %v852 = vadd.f32 %v785, %v839
    %v853 = vadd.f32 %v786, %v839
    %v854 = vadd.f32 %v787, %v839
    %v855 = vadd.f32 %v788, %v839
    %v856 = vadd.f32 %v789, %v839
    %v857 = vadd.f32 %v790, %v839
    %v858 = vadd.f32 %v791, %v839
    %v859 = vadd.f32 %v792, %v839
    %v860 = vadd.f32 %v793, %v839
    %v861 = vadd.f32 %v794, %v839
    %v862 = vadd.f32 %v795, %v839
    %v863 = vadd.f32 %v796, %v839
    %v864 = vadd.f32 %v797, %v839
    %v865 = vadd.f32 %v798, %v839
    %v866 = vadd.f32 %v799, %v839
    %v867 = vadd.f32 %v800, %v839
    %v868 = vadd.f32 %v801, %v839
    %v869 = vadd.f32 %v802, %v839
    %v870 = vadd.f32 %v803, %v839
    %v871 = vadd.f32 %v804, %v839
    %v872 = vadd.f32 %v805, %v839
    %v873 = vadd.f32 %v806, %v839
    %v874 = vadd.f32 %v807, %v839
    %v875 = vadd.f32 %v808, %v839
    %v876 = vadd.f32 %v809, %v839
    %v877 = vadd.f32 %v810, %v839
    %v878 = vadd.f32 %v811, %v839
    %v879 = vadd.f32 %v812, %v839
    %v880 = vadd.f32 %v813, %v839
    %v881 = vadd.f32 %v814, %v839
    %v882 = vadd.f32 %v815, %v839
    %v883 = vadd.f32 %v816, %v839
    %v884 = vadd.f32 %v817, %v839
    %v885 = vadd.f32 %v818, %v839
    %v886 = vadd.f32 %v819, %v839
    %v887 = vadd.f32 %v820, %v839
    %v888 = vadd.f32 %v821, %v839
    %v889 = vadd.f32 %v822, %v839
    %v890 = vadd.f32 %v823, %v839
    %v891 = vadd.f32 %v824, %v839
    %v892 = vadd.f32 %v825, %v839
    %v893 = vadd.f32 %v826, %v839
    %v894 = vadd.f32 %v827, %v839
    %v895 = vadd.f32 %v828, %v839
    %v896 = vadd.f32 %v829, %v839
    %v897 = vadd.f32 %v830, %v839
    %v898 = vadd.f32 %v831, %v839
    %v899 = vadd.f32 %v832, %v839
    %v900 = vadd.f32 %v833, %v839
    %v901 = vadd.f32 %v834, %v839
    %v902 = vadd.f32 %v835, %v839
    %v903 = vadd.f32 %v836, %v839
    %v904 = vmax.f32 %v841, 0.0
    %v905 = vmax.f32 %v842, 0.0
    %v906 = vmax.f32 %v843, 0.0
    %v907 = vmax.f32 %v844, 0.0
    %v908 = vmax.f32 %v845, 0.0
    %v909 = vmax.f32 %v846, 0.0
    %v910 = vmax.f32 %v847, 0.0
    %v911 = vmax.f32 %v848, 0.0
    %v912 = vmax.f32 %v849, 0.0
    %v913 = vmax.f32 %v850, 0.0
    %v914 = vmax.f32 %v851, 0.0
    %v915 = vmax.f32 %v852, 0.0
    %v916 = vmax.f32 %v853, 0.0
    %v917 = vmax.f32 %v854, 0.0
    %v918 = vmax.f32 %v855, 0.0
    %v919 = vmax.f32 %v856, 0.0
    %v920 = vmax.f32 %v857, 0.0
    %v921 = vmax.f32 %v858, 0.0
    %v922 = vmax.f32 %v859, 0.0
    %v923 = vmax.f32 %v860, 0.0
    %v924 = vmax.f32 %v861, 0.0
    %v925 = vmax.f32 %v862, 0.0
    %v926 = vmax.f32 %v863, 0.0
    %v927 = vmax.f32 %v864, 0.0
    %v928 = vmax.f32 %v865, 0.0
    %v929 = vmax.f32 %v866, 0.0
    %v930 = vmax.f32 %v867, 0.0
    %v931 = vmax.f32 %v868, 0.0
    %v932 = vmax.f32 %v869, 0.0
    %v933 = vmax.f32 %v870, 0.0
    %v934 = vmax.f32 %v871, 0.0
    %v935 = vmax.f32 %v872, 0.0
    %v936 = vmax.f32 %v873, 0.0
    %v937 = vmax.f32 %v874, 0.0
    %v938 = vmax.f32 %v875, 0.0
    %v939 = vmax.f32 %v876, 0.0
    %v940 = vmax.f32 %v877, 0.0
    %v941 = vmax.f32 %v878, 0.0
    %v942 = vmax.f32 %v879, 0.0
    %v943 = vmax.f32 %v880, 0.0
    %v944 = vmax.f32 %v881, 0.0
    %v945 = vmax.f32 %v882, 0.0
    %v946 = vmax.f32 %v883, 0.0
    %v947 = vmax.f32 %v884, 0.0
    %v948 = vmax.f32 %v885, 0.0
    %v949 = vmax.f32 %v886, 0.0
    %v950 = vmax.f32 %v887, 0.0
    %v951 = vmax.f32 %v888, 0.0
    %v952 = vmax.f32 %v889, 0.0
    %v953 = vmax.f32 %v890, 0.0
    %v954 = vmax.f32 %v891, 0.0
    %v955 = vmax.f32 %v892, 0.0
    %v956 = vmax.f32 %v893, 0.0
    %v957 = vmax.f32 %v894, 0.0
    %v958 = vmax.f32 %v895, 0.0
    %v959 = vmax.f32 %v896, 0.0
    %v960 = vmax.f32 %v897, 0.0
    %v961 = vmax.f32 %v898, 0.0
    %v962 = vmax.f32 %v899, 0.0
    %v963 = vmax.f32 %v900, 0.0
    %v964 = vmax.f32 %v901, 0.0
    %v965 = vmax.f32 %v902, 0.0
    %v966 = vmax.f32 %v903, 0.0
    %v967 = vld [vmem:[%s4] sm:$0xff]
    %v968 = vld [vmem:[%s4 + $0x8] sm:$0xff]
    %v969 = vld [vmem:[%s4 + $0x10] sm:$0xff]
    %v970 = vld [vmem:[%s4 + $0x18] sm:$0xff]
    %v971 = vld [vmem:[%s4 + $0x20] sm:$0xff]
    %v972 = vld [vmem:[%s4 + $0x28] sm:$0xff]
    %v973 = vld [vmem:[%s4 + $0x30] sm:$0xff]
    %v974 = vld [vmem:[%s4 + $0x38] sm:$0xff]
    %v975 = vld [vmem:[%s4 + $0x40] sm:$0xff]
    %v976 = vld [vmem:[%s4 + $0x48] sm:$0xff]
    %v977 = vld [vmem:[%s4 + $0x50] sm:$0xff]
    %v978 = vld [vmem:[%s4 + $0x58] sm:$0xff]
    %v979 = vld [vmem:[%s4 + $0x60] sm:$0xff]
    %v980 = vld [vmem:[%s4 + $0x68] sm:$0xff]
    %v981 = vld [vmem:[%s4 + $0x70] sm:$0xff]
    %v982 = vld [vmem:[%s4 + $0x78] sm:$0xff]
    %v983 = vld [vmem:[%s5] sm:$0x1]
    %v985 = vperm.slane %v983, 0
    %987 = vmatpush.msra.mxu0 %v982
    %988 = vmatpush.msra.mxu0 %v981
    %989 = vmatpush.msra.mxu0 %v980
    %990 = vmatpush.msra.mxu0 %v979
    %991 = vmatpush.msra.mxu0 %v978
    %992 = vmatpush.msra.mxu0 %v977
    %993 = vmatpush.msra.mxu0 %v976
    %994 = vmatpush.msra.mxu0 %v975
    %995 = vmatpush.msra.mxu0 %v974
    %996 = vmatpush.msra.mxu0 %v973
    %997 = vmatpush.msra.mxu0 %v972
    %998 = vmatpush.msra.mxu0 %v971
    %999 = vmatpush.msra.mxu0 %v970
    %1000 = vmatpush.msra.mxu0 %v969
    %1001 = vmatpush.msra.mxu0 %v968
    %1002 = vmatpush.msra.mxu0 %v967
    %1003 = vmatmul.f32.gmra.mxu0 %v904
    %v1004 = vpop.f32.mrf.mxu0
    %v1005 = vadd.f32 %v985, %v1004
    %1006 = vmatmul.f32.gmra.mxu0 %v905
    %v1007 = vpop.f32.mrf.mxu0
    %v1008 = vadd.f32 %v985, %v1007
    %1009 = vmatmul.f32.gmra.mxu0 %v906
    %v1010 = vpop.f32.mrf.mxu0
    %v1011 = vadd.f32 %v985, %v1010
    %1012 = vmatmul.f32.gmra.mxu0 %v907
    %v1013 = vpop.f32.mrf.mxu0
    %v1014 = vadd.f32 %v985, %v1013
    %1015 = vmatmul.f32.gmra.mxu0 %v908
    %v1016 = vpop.f32.mrf.mxu0
    %v1017 = vadd.f32 %v985, %v1016
    %1018 = vmatmul.f32.gmra.mxu0 %v909
    %v1019 = vpop.f32.mrf.mxu0
    %v1020 = vadd.f32 %v985, %v1019
    %1021 = vmatmul.f32.gmra.mxu0 %v910
    %v1022 = vpop.f32.mrf.mxu0
    %v1023 = vadd.f32 %v985, %v1022
    %1024 = vmatmul.f32.gmra.mxu0 %v911
    %v1025 = vpop.f32.mrf.mxu0
    %v1026 = vadd.f32 %v985, %v1025
    %1027 = vmatmul.f32.gmra.mxu0 %v912
    %v1028 = vpop.f32.mrf.mxu0
    %v1029 = vadd.f32 %v985, %v1028
    %1030 = vmatmul.f32.gmra.mxu0 %v913
    %v1031 = vpop.f32.mrf.mxu0
    %v1032 = vadd.f32 %v985, %v1031
    %1033 = vmatmul.f32.gmra.mxu0 %v914
    %v1034 = vpop.f32.mrf.mxu0
    %v1035 = vadd.f32 %v985, %v1034
    %1036 = vmatmul.f32.gmra.mxu0 %v915
    %v1037 = vpop.f32.mrf.mxu0
    %v1038 = vadd.f32 %v985, %v1037
    %1039 = vmatmul.f32.gmra.mxu0 %v916
    %v1040 = vpop.f32.mrf.mxu0
    %v1041 = vadd.f32 %v985, %v1040
    %1042 = vmatmul.f32.gmra.mxu0 %v917
    %v1043 = vpop.f32.mrf.mxu0
    %v1044 = vadd.f32 %v985, %v1043
    %1045 = vmatmul.f32.gmra.mxu0 %v918
    %v1046 = vpop.f32.mrf.mxu0
    %v1047 = vadd.f32 %v985, %v1046
    %1048 = vmatmul.f32.gmra.mxu0 %v919
    %v1049 = vpop.f32.mrf.mxu0
    %v1050 = vadd.f32 %v985, %v1049
    %1051 = vmatmul.f32.gmra.mxu0 %v920
    %v1052 = vpop.f32.mrf.mxu0
    %v1053 = vadd.f32 %v985, %v1052
    %1054 = vmatmul.f32.gmra.mxu0 %v921
    %v1055 = vpop.f32.mrf.mxu0
    %v1056 = vadd.f32 %v985, %v1055
    %1057 = vmatmul.f32.gmra.mxu0 %v922
    %v1058 = vpop.f32.mrf.mxu0
    %v1059 = vadd.f32 %v985, %v1058
    %1060 = vmatmul.f32.gmra.mxu0 %v923
    %v1061 = vpop.f32.mrf.mxu0
    %v1062 = vadd.f32 %v985, %v1061
    %1063 = vmatmul.f32.gmra.mxu0 %v924
    %v1064 = vpop.f32.mrf.mxu0
    %v1065 = vadd.f32 %v985, %v1064
    %1066 = vmatmul.f32.gmra.mxu0 %v925
    %v1067 = vpop.f32.mrf.mxu0
    %v1068 = vadd.f32 %v985, %v1067
    %1069 = vmatmul.f32.gmra.mxu0 %v926
    %v1070 = vpop.f32.mrf.mxu0
    %v1071 = vadd.f32 %v985, %v1070
    %1072 = vmatmul.f32.gmra.mxu0 %v927
    %v1073 = vpop.f32.mrf.mxu0
    %v1074 = vadd.f32 %v985, %v1073
    %1075 = vmatmul.f32.gmra.mxu0 %v928
    %v1076 = vpop.f32.mrf.mxu0
    %v1077 = vadd.f32 %v985, %v1076
    %1078 = vmatmul.f32.gmra.mxu0 %v929
    %v1079 = vpop.f32.mrf.mxu0
    %v1080 = vadd.f32 %v985, %v1079
    %1081 = vmatmul.f32.gmra.mxu0 %v930
    %v1082 = vpop.f32.mrf.mxu0
    %v1083 = vadd.f32 %v985, %v1082
    %1084 = vmatmul.f32.gmra.mxu0 %v931
    %v1085 = vpop.f32.mrf.mxu0
    %v1086 = vadd.f32 %v985, %v1085
    %1087 = vmatmul.f32.gmra.mxu0 %v932
    %v1088 = vpop.f32.mrf.mxu0
    %v1089 = vadd.f32 %v985, %v1088
    %1090 = vmatmul.f32.gmra.mxu0 %v933
    %v1091 = vpop.f32.mrf.mxu0
    %v1092 = vadd.f32 %v985, %v1091
    %1093 = vmatmul.f32.gmra.mxu0 %v934
    %v1094 = vpop.f32.mrf.mxu0
    %v1095 = vadd.f32 %v985, %v1094
    %1096 = vmatmul.f32.gmra.mxu0 %v935
    %v1097 = vpop.f32.mrf.mxu0
    %v1098 = vadd.f32 %v985, %v1097
    %1099 = vmatmul.f32.gmra.mxu0 %v936
    %v1100 = vpop.f32.mrf.mxu0
    %v1101 = vadd.f32 %v985, %v1100
    %1102 = vmatmul.f32.gmra.mxu0 %v937
    %v1103 = vpop.f32.mrf.mxu0
    %v1104 = vadd.f32 %v985, %v1103
    %1105 = vmatmul.f32.gmra.mxu0 %v938
    %v1106 = vpop.f32.mrf.mxu0
    %v1107 = vadd.f32 %v985, %v1106
    %1108 = vmatmul.f32.gmra.mxu0 %v939
    %v1109 = vpop.f32.mrf.mxu0
    %v1110 = vadd.f32 %v985, %v1109
    %1111 = vmatmul.f32.gmra.mxu0 %v940
    %v1112 = vpop.f32.mrf.mxu0
    %v1113 = vadd.f32 %v985, %v1112
    %1114 = vmatmul.f32.gmra.mxu0 %v941
    %v1115 = vpop.f32.mrf.mxu0
    %v1116 = vadd.f32 %v985, %v1115
    %1117 = vmatmul.f32.gmra.mxu0 %v942
    %v1118 = vpop.f32.mrf.mxu0
    %v1119 = vadd.f32 %v985, %v1118
    %1120 = vmatmul.f32.gmra.mxu0 %v943
    %v1121 = vpop.f32.mrf.mxu0
    %v1122 = vadd.f32 %v985, %v1121
    %1123 = vmatmul.f32.gmra.mxu0 %v944
    %v1124 = vpop.f32.mrf.mxu0
    %v1125 = vadd.f32 %v985, %v1124
    %1126 = vmatmul.f32.gmra.mxu0 %v945
    %v1127 = vpop.f32.mrf.mxu0
    %v1128 = vadd.f32 %v985, %v1127
    %1129 = vmatmul.f32.gmra.mxu0 %v946
    %v1130 = vpop.f32.mrf.mxu0
    %v1131 = vadd.f32 %v985, %v1130
    %1132 = vmatmul.f32.gmra.mxu0 %v947
    %v1133 = vpop.f32.mrf.mxu0
    %v1134 = vadd.f32 %v985, %v1133
    %1135 = vmatmul.f32.gmra.mxu0 %v948
    %v1136 = vpop.f32.mrf.mxu0
    %v1137 = vadd.f32 %v985, %v1136
    %1138 = vmatmul.f32.gmra.mxu0 %v949
    %v1139 = vpop.f32.mrf.mxu0
    %v1140 = vadd.f32 %v985, %v1139
    %1141 = vmatmul.f32.gmra.mxu0 %v950
    %v1142 = vpop.f32.mrf.mxu0
    %v1143 = vadd.f32 %v985, %v1142
    %1144 = vmatmul.f32.gmra.mxu0 %v951
    %v1145 = vpop.f32.mrf.mxu0
    %v1146 = vadd.f32 %v985, %v1145
    %1147 = vmatmul.f32.gmra.mxu0 %v952
    %v1148 = vpop.f32.mrf.mxu0
    %v1149 = vadd.f32 %v985, %v1148
    %1150 = vmatmul.f32.gmra.mxu0 %v953
    %v1151 = vpop.f32.mrf.mxu0
    %v1152 = vadd.f32 %v985, %v1151
    %1153 = vmatmul.f32.gmra.mxu0 %v954
    %v1154 = vpop.f32.mrf.mxu0
    %v1155 = vadd.f32 %v985, %v1154
    %1156 = vmatmul.f32.gmra.mxu0 %v955
    %v1157 = vpop.f32.mrf.mxu0
    %v1158 = vadd.f32 %v985, %v1157
    %1159 = vmatmul.f32.gmra.mxu0 %v956
    %v1160 = vpop.f32.mrf.mxu0
    %v1161 = vadd.f32 %v985, %v1160
    %1162 = vmatmul.f32.gmra.mxu0 %v957
    %v1163 = vpop.f32.mrf.mxu0
    %v1164 = vadd.f32 %v985, %v1163
    %1165 = vmatmul.f32.gmra.mxu0 %v958
    %v1166 = vpop.f32.mrf.mxu0
    %v1167 = vadd.f32 %v985, %v1166
    %1168 = vmatmul.f32.gmra.mxu0 %v959
    %v1169 = vpop.f32.mrf.mxu0
    %v1170 = vadd.f32 %v985, %v1169
    %1171 = vmatmul.f32.gmra.mxu0 %v960
    %v1172 = vpop.f32.mrf.mxu0
    %v1173 = vadd.f32 %v985, %v1172
    %1174 = vmatmul.f32.gmra.mxu0 %v961
    %v1175 = vpop.f32.mrf.mxu0
    %v1176 = vadd.f32 %v985, %v1175
    %1177 = vmatmul.f32.gmra.mxu0 %v962
    %v1178 = vpop.f32.mrf.mxu0
    %v1179 = vadd.f32 %v985, %v1178
    %1180 = vmatmul.f32.gmra.mxu0 %v963
    %v1181 = vpop.f32.mrf.mxu0
    %v1182 = vadd.f32 %v985, %v1181
    %1183 = vmatmul.f32.gmra.mxu0 %v964
    %v1184 = vpop.f32.mrf.mxu0
    %v1185 = vadd.f32 %v985, %v1184
    %1186 = vmatmul.f32.gmra.mxu0 %v965
    %v1187 = vpop.f32.mrf.mxu0
    %v1188 = vadd.f32 %v985, %v1187
    %1189 = vmatmul.f32.gmra.mxu0 %v966
    %v1190 = vpop.f32.mrf.mxu0
    %v1191 = vadd.f32 %v985, %v1190
    %1192 = vdwg.mxu0
    %v1193 = vmax.f32 %v1005, 0.0
    %v1194 = vmax.f32 %v1008, 0.0
    %v1195 = vmax.f32 %v1011, 0.0
    %v1196 = vmax.f32 %v1014, 0.0
    %v1197 = vmax.f32 %v1017, 0.0
    %v1198 = vmax.f32 %v1020, 0.0
    %v1199 = vmax.f32 %v1023, 0.0
    %v1200 = vmax.f32 %v1026, 0.0
    %v1201 = vmax.f32 %v1029, 0.0
    %v1202 = vmax.f32 %v1032, 0.0
    %v1203 = vmax.f32 %v1035, 0.0
    %v1204 = vmax.f32 %v1038, 0.0
    %v1205 = vmax.f32 %v1041, 0.0
    %v1206 = vmax.f32 %v1044, 0.0
    %v1207 = vmax.f32 %v1047, 0.0
    %v1208 = vmax.f32 %v1050, 0.0
    %v1209 = vmax.f32 %v1053, 0.0
    %v1210 = vmax.f32 %v1056, 0.0
    %v1211 = vmax.f32 %v1059, 0.0
    %v1212 = vmax.f32 %v1062, 0.0
    %v1213 = vmax.f32 %v1065, 0.0
    %v1214 = vmax.f32 %v1068, 0.0
    %v1215 = vmax.f32 %v1071, 0.0
    %v1216 = vmax.f32 %v1074, 0.0
    %v1217 = vmax.f32 %v1077, 0.0
    %v1218 = vmax.f32 %v1080, 0.0
    %v1219 = vmax.f32 %v1083, 0.0
    %v1220 = vmax.f32 %v1086, 0.0
    %v1221 = vmax.f32 %v1089, 0.0
    %v1222 = vmax.f32 %v1092, 0.0
    %v1223 = vmax.f32 %v1095, 0.0
    %v1224 = vmax.f32 %v1098, 0.0
    %v1225 = vmax.f32 %v1101, 0.0
    %v1226 = vmax.f32 %v1104, 0.0
    %v1227 = vmax.f32 %v1107, 0.0
    %v1228 = vmax.f32 %v1110, 0.0
    %v1229 = vmax.f32 %v1113, 0.0
    %v1230 = vmax.f32 %v1116, 0.0
    %v1231 = vmax.f32 %v1119, 0.0
    %v1232 = vmax.f32 %v1122, 0.0
    %v1233 = vmax.f32 %v1125, 0.0
    %v1234 = vmax.f32 %v1128, 0.0
    %v1235 = vmax.f32 %v1131, 0.0
    %v1236 = vmax.f32 %v1134, 0.0
    %v1237 = vmax.f32 %v1137, 0.0
    %v1238 = vmax.f32 %v1140, 0.0
    %v1239 = vmax.f32 %v1143, 0.0
    %v1240 = vmax.f32 %v1146, 0.0
    %v1241 = vmax.f32 %v1149, 0.0
    %v1242 = vmax.f32 %v1152, 0.0
    %v1243 = vmax.f32 %v1155, 0.0
    %v1244 = vmax.f32 %v1158, 0.0
    %v1245 = vmax.f32 %v1161, 0.0
    %v1246 = vmax.f32 %v1164, 0.0
    %v1247 = vmax.f32 %v1167, 0.0
    %v1248 = vmax.f32 %v1170, 0.0
    %v1249 = vmax.f32 %v1173, 0.0
    %v1250 = vmax.f32 %v1176, 0.0
    %v1251 = vmax.f32 %v1179, 0.0
    %v1252 = vmax.f32 %v1182, 0.0
    %v1253 = vmax.f32 %v1185, 0.0
    %v1254 = vmax.f32 %v1188, 0.0
    %v1255 = vmax.f32 %v1191, 0.0
    %v1256 = vld [vmem:[%s6] sm:$0xff]
    %v1257 = vld [vmem:[%s6 + $0x8] sm:$0xff]
    %v1258 = vld [vmem:[%s6 + $0x10] sm:$0xff]
    %v1259 = vld [vmem:[%s6 + $0x18] sm:$0xff]
    %v1260 = vld [vmem:[%s6 + $0x20] sm:$0xff]
    %v1261 = vld [vmem:[%s6 + $0x28] sm:$0xff]
    %v1262 = vld [vmem:[%s6 + $0x30] sm:$0xff]
    %v1263 = vld [vmem:[%s6 + $0x38] sm:$0xff]
    %v1264 = vld [vmem:[%s6 + $0x40] sm:$0xff]
    %v1265 = vld [vmem:[%s6 + $0x48] sm:$0xff]
    %v1266 = vld [vmem:[%s6 + $0x50] sm:$0xff]
    %v1267 = vld [vmem:[%s6 + $0x58] sm:$0xff]
    %v1268 = vld [vmem:[%s6 + $0x60] sm:$0xff]
    %v1269 = vld [vmem:[%s6 + $0x68] sm:$0xff]
    %v1270 = vld [vmem:[%s6 + $0x70] sm:$0xff]
    %v1271 = vld [vmem:[%s6 + $0x78] sm:$0xff]
    %v1272 = vld [vmem:[%s7] sm:$0x1]
    %v1274 = vperm.slane %v1272, 0
    %1276 = vmatpush.msra.mxu0 %v1271
    %1277 = vmatpush.msra.mxu0 %v1270
    %1278 = vmatpush.msra.mxu0 %v1269
    %1279 = vmatpush.msra.mxu0 %v1268
    %1280 = vmatpush.msra.mxu0 %v1267
    %1281 = vmatpush.msra.mxu0 %v1266
    %1282 = vmatpush.msra.mxu0 %v1265
    %1283 = vmatpush.msra.mxu0 %v1264
    %1284 = vmatpush.msra.mxu0 %v1263
    %1285 = vmatpush.msra.mxu0 %v1262
    %1286 = vmatpush.msra.mxu0 %v1261
    %1287 = vmatpush.msra.mxu0 %v1260
    %1288 = vmatpush.msra.mxu0 %v1259
    %1289 = vmatpush.msra.mxu0 %v1258
    %1290 = vmatpush.msra.mxu0 %v1257
    %1291 = vmatpush.msra.mxu0 %v1256
    %1292 = vmatmul.f32.gmra.mxu0 %v1193
    %v1293 = vpop.f32.mrf.mxu0
    %v1294 = vadd.f32 %v1274, %v1293
    %1295 = vmatmul.f32.gmra.mxu0 %v1194
    %v1296 = vpop.f32.mrf.mxu0
    %v1297 = vadd.f32 %v1274, %v1296
    %1298 = vmatmul.f32.gmra.mxu0 %v1195
    %v1299 = vpop.f32.mrf.mxu0
    %v1300 = vadd.f32 %v1274, %v1299
    %1301 = vmatmul.f32.gmra.mxu0 %v1196
    %v1302 = vpop.f32.mrf.mxu0
    %v1303 = vadd.f32 %v1274, %v1302
    %1304 = vmatmul.f32.gmra.mxu0 %v1197
    %v1305 = vpop.f32.mrf.mxu0
    %v1306 = vadd.f32 %v1274, %v1305
    %1307 = vmatmul.f32.gmra.mxu0 %v1198
    %v1308 = vpop.f32.mrf.mxu0
    %v1309 = vadd.f32 %v1274, %v1308
    %1310 = vmatmul.f32.gmra.mxu0 %v1199
    %v1311 = vpop.f32.mrf.mxu0
    %v1312 = vadd.f32 %v1274, %v1311
    %1313 = vmatmul.f32.gmra.mxu0 %v1200
    %v1314 = vpop.f32.mrf.mxu0
    %v1315 = vadd.f32 %v1274, %v1314
    %1316 = vmatmul.f32.gmra.mxu0 %v1201
    %v1317 = vpop.f32.mrf.mxu0
    %v1318 = vadd.f32 %v1274, %v1317
    %1319 = vmatmul.f32.gmra.mxu0 %v1202
    %v1320 = vpop.f32.mrf.mxu0
    %v1321 = vadd.f32 %v1274, %v1320
    %1322 = vmatmul.f32.gmra.mxu0 %v1203
    %v1323 = vpop.f32.mrf.mxu0
    %v1324 = vadd.f32 %v1274, %v1323
    %1325 = vmatmul.f32.gmra.mxu0 %v1204
    %v1326 = vpop.f32.mrf.mxu0
    %v1327 = vadd.f32 %v1274, %v1326
    %1328 = vmatmul.f32.gmra.mxu0 %v1205
    %v1329 = vpop.f32.mrf.mxu0
    %v1330 = vadd.f32 %v1274, %v1329
    %1331 = vmatmul.f32.gmra.mxu0 %v1206
    %v1332 = vpop.f32.mrf.mxu0
    %v1333 = vadd.f32 %v1274, %v1332
    %1334 = vmatmul.f32.gmra.mxu0 %v1207
    %v1335 = vpop.f32.mrf.mxu0
    %v1336 = vadd.f32 %v1274, %v1335
    %1337 = vmatmul.f32.gmra.mxu0 %v1208
    %v1338 = vpop.f32.mrf.mxu0
    %v1339 = vadd.f32 %v1274, %v1338
    %1340 = vmatmul.f32.gmra.mxu0 %v1209
    %v1341 = vpop.f32.mrf.mxu0
    %v1342 = vadd.f32 %v1274, %v1341
    %1343 = vmatmul.f32.gmra.mxu0 %v1210
    %v1344 = vpop.f32.mrf.mxu0
    %v1345 = vadd.f32 %v1274, %v1344
    %1346 = vmatmul.f32.gmra.mxu0 %v1211
    %v1347 = vpop.f32.mrf.mxu0
    %v1348 = vadd.f32 %v1274, %v1347
    %1349 = vmatmul.f32.gmra.mxu0 %v1212
    %v1350 = vpop.f32.mrf.mxu0
    %v1351 = vadd.f32 %v1274, %v1350
    %1352 = vmatmul.f32.gmra.mxu0 %v1213
    %v1353 = vpop.f32.mrf.mxu0
    %v1354 = vadd.f32 %v1274, %v1353
    %1355 = vmatmul.f32.gmra.mxu0 %v1214
    %v1356 = vpop.f32.mrf.mxu0
    %v1357 = vadd.f32 %v1274, %v1356
    %1358 = vmatmul.f32.gmra.mxu0 %v1215
    %v1359 = vpop.f32.mrf.mxu0
    %v1360 = vadd.f32 %v1274, %v1359
    %1361 = vmatmul.f32.gmra.mxu0 %v1216
    %v1362 = vpop.f32.mrf.mxu0
    %v1363 = vadd.f32 %v1274, %v1362
    %1364 = vmatmul.f32.gmra.mxu0 %v1217
    %v1365 = vpop.f32.mrf.mxu0
    %v1366 = vadd.f32 %v1274, %v1365
    %1367 = vmatmul.f32.gmra.mxu0 %v1218
    %v1368 = vpop.f32.mrf.mxu0
    %v1369 = vadd.f32 %v1274, %v1368
    %1370 = vmatmul.f32.gmra.mxu0 %v1219
    %v1371 = vpop.f32.mrf.mxu0
    %v1372 = vadd.f32 %v1274, %v1371
    %1373 = vmatmul.f32.gmra.mxu0 %v1220
    %v1374 = vpop.f32.mrf.mxu0
    %v1375 = vadd.f32 %v1274, %v1374
    %1376 = vmatmul.f32.gmra.mxu0 %v1221
    %v1377 = vpop.f32.mrf.mxu0
    %v1378 = vadd.f32 %v1274, %v1377
    %1379 = vmatmul.f32.gmra.mxu0 %v1222
    %v1380 = vpop.f32.mrf.mxu0
    %v1381 = vadd.f32 %v1274, %v1380
    %1382 = vmatmul.f32.gmra.mxu0 %v1223
    %v1383 = vpop.f32.mrf.mxu0
    %v1384 = vadd.f32 %v1274, %v1383
    %1385 = vmatmul.f32.gmra.mxu0 %v1224
    %v1386 = vpop.f32.mrf.mxu0
    %v1387 = vadd.f32 %v1274, %v1386
    %1388 = vmatmul.f32.gmra.mxu0 %v1225
    %v1389 = vpop.f32.mrf.mxu0
    %v1390 = vadd.f32 %v1274, %v1389
    %1391 = vmatmul.f32.gmra.mxu0 %v1226
    %v1392 = vpop.f32.mrf.mxu0
    %v1393 = vadd.f32 %v1274, %v1392
    %1394 = vmatmul.f32.gmra.mxu0 %v1227
    %v1395 = vpop.f32.mrf.mxu0
    %v1396 = vadd.f32 %v1274, %v1395
    %1397 = vmatmul.f32.gmra.mxu0 %v1228
    %v1398 = vpop.f32.mrf.mxu0
    %v1399 = vadd.f32 %v1274, %v1398
    %1400 = vmatmul.f32.gmra.mxu0 %v1229
    %v1401 = vpop.f32.mrf.mxu0
    %v1402 = vadd.f32 %v1274, %v1401
    %1403 = vmatmul.f32.gmra.mxu0 %v1230
    %v1404 = vpop.f32.mrf.mxu0
    %v1405 = vadd.f32 %v1274, %v1404
    %1406 = vmatmul.f32.gmra.mxu0 %v1231
    %v1407 = vpop.f32.mrf.mxu0
    %v1408 = vadd.f32 %v1274, %v1407
    %1409 = vmatmul.f32.gmra.mxu0 %v1232
    %v1410 = vpop.f32.mrf.mxu0
    %v1411 = vadd.f32 %v1274, %v1410
    %1412 = vmatmul.f32.gmra.mxu0 %v1233
    %v1413 = vpop.f32.mrf.mxu0
    %v1414 = vadd.f32 %v1274, %v1413
    %1415 = vmatmul.f32.gmra.mxu0 %v1234
    %v1416 = vpop.f32.mrf.mxu0
    %v1417 = vadd.f32 %v1274, %v1416
    %1418 = vmatmul.f32.gmra.mxu0 %v1235
    %v1419 = vpop.f32.mrf.mxu0
    %v1420 = vadd.f32 %v1274, %v1419
    %1421 = vmatmul.f32.gmra.mxu0 %v1236
    %v1422 = vpop.f32.mrf.mxu0
    %v1423 = vadd.f32 %v1274, %v1422
    %1424 = vmatmul.f32.gmra.mxu0 %v1237
    %v1425 = vpop.f32.mrf.mxu0
    %v1426 = vadd.f32 %v1274, %v1425
    %1427 = vmatmul.f32.gmra.mxu0 %v1238
    %v1428 = vpop.f32.mrf.mxu0
    %v1429 = vadd.f32 %v1274, %v1428
    %1430 = vmatmul.f32.gmra.mxu0 %v1239
    %v1431 = vpop.f32.mrf.mxu0
    %v1432 = vadd.f32 %v1274, %v1431
    %1433 = vmatmul.f32.gmra.mxu0 %v1240
    %v1434 = vpop.f32.mrf.mxu0
    %v1435 = vadd.f32 %v1274, %v1434
    %1436 = vmatmul.f32.gmra.mxu0 %v1241
    %v1437 = vpop.f32.mrf.mxu0
    %v1438 = vadd.f32 %v1274, %v1437
    %1439 = vmatmul.f32.gmra.mxu0 %v1242
    %v1440 = vpop.f32.mrf.mxu0
    %v1441 = vadd.f32 %v1274, %v1440
    %1442 = vmatmul.f32.gmra.mxu0 %v1243
    %v1443 = vpop.f32.mrf.mxu0
    %v1444 = vadd.f32 %v1274, %v1443
    %1445 = vmatmul.f32.gmra.mxu0 %v1244
    %v1446 = vpop.f32.mrf.mxu0
    %v1447 = vadd.f32 %v1274, %v1446
    %1448 = vmatmul.f32.gmra.mxu0 %v1245
    %v1449 = vpop.f32.mrf.mxu0
    %v1450 = vadd.f32 %v1274, %v1449
    %1451 = vmatmul.f32.gmra.mxu0 %v1246
    %v1452 = vpop.f32.mrf.mxu0
    %v1453 = vadd.f32 %v1274, %v1452
    %1454 = vmatmul.f32.gmra.mxu0 %v1247
    %v1455 = vpop.f32.mrf.mxu0
    %v1456 = vadd.f32 %v1274, %v1455
    %1457 = vmatmul.f32.gmra.mxu0 %v1248
    %v1458 = vpop.f32.mrf.mxu0
    %v1459 = vadd.f32 %v1274, %v1458
    %1460 = vmatmul.f32.gmra.mxu0 %v1249
    %v1461 = vpop.f32.mrf.mxu0
    %v1462 = vadd.f32 %v1274, %v1461
    %1463 = vmatmul.f32.gmra.mxu0 %v1250
    %v1464 = vpop.f32.mrf.mxu0
    %v1465 = vadd.f32 %v1274, %v1464
    %1466 = vmatmul.f32.gmra.mxu0 %v1251
    %v1467 = vpop.f32.mrf.mxu0
    %v1468 = vadd.f32 %v1274, %v1467
    %1469 = vmatmul.f32.gmra.mxu0 %v1252
    %v1470 = vpop.f32.mrf.mxu0
    %v1471 = vadd.f32 %v1274, %v1470
    %1472 = vmatmul.f32.gmra.mxu0 %v1253
    %v1473 = vpop.f32.mrf.mxu0
    %v1474 = vadd.f32 %v1274, %v1473
    %1475 = vmatmul.f32.gmra.mxu0 %v1254
    %v1476 = vpop.f32.mrf.mxu0
    %v1477 = vadd.f32 %v1274, %v1476
    %1478 = vmatmul.f32.gmra.mxu0 %v1255
    %v1479 = vpop.f32.mrf.mxu0
    %v1480 = vadd.f32 %v1274, %v1479
    %1481 = vdwg.mxu0
    %v1482 = vmax.f32 %v1294, 0.0
    %v1483 = vmax.f32 %v1297, 0.0
    %v1484 = vmax.f32 %v1300, 0.0
    %v1485 = vmax.f32 %v1303, 0.0
    %v1486 = vmax.f32 %v1306, 0.0
    %v1487 = vmax.f32 %v1309, 0.0
    %v1488 = vmax.f32 %v1312, 0.0
    %v1489 = vmax.f32 %v1315, 0.0
    %v1490 = vmax.f32 %v1318, 0.0
    %v1491 = vmax.f32 %v1321, 0.0
    %v1492 = vmax.f32 %v1324, 0.0
    %v1493 = vmax.f32 %v1327, 0.0
    %v1494 = vmax.f32 %v1330, 0.0
    %v1495 = vmax.f32 %v1333, 0.0
    %v1496 = vmax.f32 %v1336, 0.0
    %v1497 = vmax.f32 %v1339, 0.0
    %v1498 = vmax.f32 %v1342, 0.0
    %v1499 = vmax.f32 %v1345, 0.0
    %v1500 = vmax.f32 %v1348, 0.0
    %v1501 = vmax.f32 %v1351, 0.0
    %v1502 = vmax.f32 %v1354, 0.0
    %v1503 = vmax.f32 %v1357, 0.0
    %v1504 = vmax.f32 %v1360, 0.0
    %v1505 = vmax.f32 %v1363, 0.0
    %v1506 = vmax.f32 %v1366, 0.0
    %v1507 = vmax.f32 %v1369, 0.0
    %v1508 = vmax.f32 %v1372, 0.0
    %v1509 = vmax.f32 %v1375, 0.0
    %v1510 = vmax.f32 %v1378, 0.0
    %v1511 = vmax.f32 %v1381, 0.0
    %v1512 = vmax.f32 %v1384, 0.0
    %v1513 = vmax.f32 %v1387, 0.0
    %v1514 = vmax.f32 %v1390, 0.0
    %v1515 = vmax.f32 %v1393, 0.0
    %v1516 = vmax.f32 %v1396, 0.0
    %v1517 = vmax.f32 %v1399, 0.0
    %v1518 = vmax.f32 %v1402, 0.0
    %v1519 = vmax.f32 %v1405, 0.0
    %v1520 = vmax.f32 %v1408, 0.0
    %v1521 = vmax.f32 %v1411, 0.0
    %v1522 = vmax.f32 %v1414, 0.0
    %v1523 = vmax.f32 %v1417, 0.0
    %v1524 = vmax.f32 %v1420, 0.0
    %v1525 = vmax.f32 %v1423, 0.0
    %v1526 = vmax.f32 %v1426, 0.0
    %v1527 = vmax.f32 %v1429, 0.0
    %v1528 = vmax.f32 %v1432, 0.0
    %v1529 = vmax.f32 %v1435, 0.0
    %v1530 = vmax.f32 %v1438, 0.0
    %v1531 = vmax.f32 %v1441, 0.0
    %v1532 = vmax.f32 %v1444, 0.0
    %v1533 = vmax.f32 %v1447, 0.0
    %v1534 = vmax.f32 %v1450, 0.0
    %v1535 = vmax.f32 %v1453, 0.0
    %v1536 = vmax.f32 %v1456, 0.0
    %v1537 = vmax.f32 %v1459, 0.0
    %v1538 = vmax.f32 %v1462, 0.0
    %v1539 = vmax.f32 %v1465, 0.0
    %v1540 = vmax.f32 %v1468, 0.0
    %v1541 = vmax.f32 %v1471, 0.0
    %v1542 = vmax.f32 %v1474, 0.0
    %v1543 = vmax.f32 %v1477, 0.0
    %v1544 = vmax.f32 %v1480, 0.0
    %1545 = vst [vmem:[#allocation2] sm:$0xff] %v1482
    %1546 = vst [vmem:[#allocation2 + $0x8] sm:$0xff] %v1483
    %1547 = vst [vmem:[#allocation2 + $0x10] sm:$0xff] %v1484
    %1548 = vst [vmem:[#allocation2 + $0x18] sm:$0xff] %v1485
    %1549 = vst [vmem:[#allocation2 + $0x20] sm:$0xff] %v1486
    %1550 = vst [vmem:[#allocation2 + $0x28] sm:$0xff] %v1487
    %1551 = vst [vmem:[#allocation2 + $0x30] sm:$0xff] %v1488
    %1552 = vst [vmem:[#allocation2 + $0x38] sm:$0xff] %v1489
    %1553 = vst [vmem:[#allocation2 + $0x40] sm:$0xff] %v1490
    %1554 = vst [vmem:[#allocation2 + $0x48] sm:$0xff] %v1491
    %1555 = vst [vmem:[#allocation2 + $0x50] sm:$0xff] %v1492
    %1556 = vst [vmem:[#allocation2 + $0x58] sm:$0xff] %v1493
    %1557 = vst [vmem:[#allocation2 + $0x60] sm:$0xff] %v1494
    %1558 = vst [vmem:[#allocation2 + $0x68] sm:$0xff] %v1495
    %1559 = vst [vmem:[#allocation2 + $0x70] sm:$0xff] %v1496
    %1560 = vst [vmem:[#allocation2 + $0x78] sm:$0xff] %v1497
    %1561 = vst [vmem:[#allocation2 + $0x80] sm:$0xff] %v1498
    %1562 = vst [vmem:[#allocation2 + $0x88] sm:$0xff] %v1499
    %1563 = vst [vmem:[#allocation2 + $0x90] sm:$0xff] %v1500
    %1564 = vst [vmem:[#allocation2 + $0x98] sm:$0xff] %v1501
    %1565 = vst [vmem:[#allocation2 + $0xa0] sm:$0xff] %v1502
    %1566 = vst [vmem:[#allocation2 + $0xa8] sm:$0xff] %v1503
    %1567 = vst [vmem:[#allocation2 + $0xb0] sm:$0xff] %v1504
    %1568 = vst [vmem:[#allocation2 + $0xb8] sm:$0xff] %v1505
    %1569 = vst [vmem:[#allocation2 + $0xc0] sm:$0xff] %v1506
    %1570 = vst [vmem:[#allocation2 + $0xc8] sm:$0xff] %v1507
    %1571 = vst [vmem:[#allocation2 + $0xd0] sm:$0xff] %v1508
    %1572 = vst [vmem:[#allocation2 + $0xd8] sm:$0xff] %v1509
    %1573 = vst [vmem:[#allocation2 + $0xe0] sm:$0xff] %v1510
    %1574 = vst [vmem:[#allocation2 + $0xe8] sm:$0xff] %v1511
    %1575 = vst [vmem:[#allocation2 + $0xf0] sm:$0xff] %v1512
    %1576 = vst [vmem:[#allocation2 + $0xf8] sm:$0xff] %v1513
    %1577 = vst [vmem:[#allocation2 + $0x100] sm:$0xff] %v1514
    %1578 = vst [vmem:[#allocation2 + $0x108] sm:$0xff] %v1515
    %1579 = vst [vmem:[#allocation2 + $0x110] sm:$0xff] %v1516
    %1580 = vst [vmem:[#allocation2 + $0x118] sm:$0xff] %v1517
    %1581 = vst [vmem:[#allocation2 + $0x120] sm:$0xff] %v1518
    %1582 = vst [vmem:[#allocation2 + $0x128] sm:$0xff] %v1519
    %1583 = vst [vmem:[#allocation2 + $0x130] sm:$0xff] %v1520
    %1584 = vst [vmem:[#allocation2 + $0x138] sm:$0xff] %v1521
    %1585 = vst [vmem:[#allocation2 + $0x140] sm:$0xff] %v1522
    %1586 = vst [vmem:[#allocation2 + $0x148] sm:$0xff] %v1523
    %1587 = vst [vmem:[#allocation2 + $0x150] sm:$0xff] %v1524
    %1588 = vst [vmem:[#allocation2 + $0x158] sm:$0xff] %v1525
    %1589 = vst [vmem:[#allocation2 + $0x160] sm:$0xff] %v1526
    %1590 = vst [vmem:[#allocation2 + $0x168] sm:$0xff] %v1527
    %1591 = vst [vmem:[#allocation2 + $0x170] sm:$0xff] %v1528
    %1592 = vst [vmem:[#allocation2 + $0x178] sm:$0xff] %v1529
    %1593 = vst [vmem:[#allocation2 + $0x180] sm:$0xff] %v1530
    %1594 = vst [vmem:[#allocation2 + $0x188] sm:$0xff] %v1531
    %1595 = vst [vmem:[#allocation2 + $0x190] sm:$0xff] %v1532
    %1596 = vst [vmem:[#allocation2 + $0x198] sm:$0xff] %v1533
    %1597 = vst [vmem:[#allocation2 + $0x1a0] sm:$0xff] %v1534
    %1598 = vst [vmem:[#allocation2 + $0x1a8] sm:$0xff] %v1535
    %1599 = vst [vmem:[#allocation2 + $0x1b0] sm:$0xff] %v1536
    %1600 = vst [vmem:[#allocation2 + $0x1b8] sm:$0xff] %v1537
    %1601 = vst [vmem:[#allocation2 + $0x1c0] sm:$0xff] %v1538
    %1602 = vst [vmem:[#allocation2 + $0x1c8] sm:$0xff] %v1539
    %1603 = vst [vmem:[#allocation2 + $0x1d0] sm:$0xff] %v1540
    %1604 = vst [vmem:[#allocation2 + $0x1d8] sm:$0xff] %v1541
    %1605 = vst [vmem:[#allocation2 + $0x1e0] sm:$0xff] %v1542
    %1606 = vst [vmem:[#allocation2 + $0x1e8] sm:$0xff] %v1543
    %1607 = vst [vmem:[#allocation2 + $0x1f0] sm:$0xf] %v1544
    // Predicated region
    $region34: #{tpu_custom_call.1} parent=1 // pred_check
      _
    $region35: #{tpu_custom_call.1} parent=1 // pred_check_branch
      %1609 = sbr.rel (0) target = $region37
    $region36: #{tpu_custom_call.1} parent=1 // pred_region
      %1611 = vsyncadd [#allocation3], 0
      %s1612 = sshll.u32 [#allocation2], 4
      %s1613 = int_to_ptr.vmem [resolvable:$true] %s1612
      %s1614 = sshll.u32 %s8, 4
      %s1615 = int_to_ptr.hbm [resolvable:$true] %s1614
      %1620 = dma.vmem_to_hbm [thread:$0]  %s1613, 8064, %s1615, [#allocation3], 128, 128, 8
    $region37: #{tpu_custom_call.1} parent=1 // pred_fallthru
      _
    // Predicated region
    $region38: #{tpu_custom_call.1} parent=1 // pred_check
      _
    $region39: #{tpu_custom_call.1} parent=1 // pred_check_branch
      %1622 = sbr.rel (0) target = $region41
    $region40: #{tpu_custom_call.1} parent=1 // pred_region
      %1624 = dma.done [#allocation3], 8064
    $region41: #{tpu_custom_call.1} parent=1 // pred_fallthru
      _
    %1625 = vsyncpa [#allocation3], 1

</llo_original>
